<compile_context>
chip_gen: v5e
topology: v5e:2x2
jax: 0.10.0
libtpu: 0.0.40
codegen_flags: <defaults>
</compile_context>

<pallas_src>
import math

import jax
import jax.numpy as jnp
from jax.experimental import pallas as pl
from jax.experimental.pallas import tpu as pltpu

IN_DIM = 2048
HIDDEN = 100
HIDDEN_PAD = 128   # lane-dense hidden width (128-wide MXU tiles)
NUM_CLASSES = 2
OUT_PAD = 8        # narrow output slab; logits in lanes 0-1, sliced in wrapper


def netd_dc_kernel(x_ref, w1_ref, t1_ref, w2_ref, t2_ref, w3_ref, b3_ref,
                   out_ref):
    # x arrives as f32 straight from HBM; cast to bf16 on the VPU (hidden
    # under the streaming DMA), f32 accumulation on the MXU.
    x = x_ref[...].astype(jnp.bfloat16)                                # (TM, 2048)

    # Layer 1: fc1 (BN scale pre-folded into w1) + shift + relu.
    h1 = jnp.dot(x, w1_ref[...], preferred_element_type=jnp.float32)   # (TM, 128)
    h1 = jnp.maximum(h1 + t1_ref[...], 0.0).astype(jnp.bfloat16)

    # Layer 2: fc2 (BN scale pre-folded into w2) + shift + relu.
    h2 = jnp.dot(h1, w2_ref[...], preferred_element_type=jnp.float32)  # (TM, 128)
    h2 = jnp.maximum(h2 + t2_ref[...], 0.0).astype(jnp.bfloat16)

    # Layer 3: fc3 logits, narrow 8-lane output (cols >= 2 are zero).
    out_ref[...] = (jnp.dot(h2, w3_ref[...], preferred_element_type=jnp.float32)
                    + b3_ref[...]).astype(out_ref.dtype)               # (TM, 8)


def netd_dc_forward(x, kern_params, *, tm=1024):
    """x: (N, 2048) float32.  Returns logits (N, 2) float32."""
    n = x.shape[0]
    assert x.shape[1] == IN_DIM
    x = x.astype(jnp.float32)   # no-op if already f32; no pad copy of x

    # Batch tile: multiple of 8 (sublane).  Cap so that when n >= 16 there are
    # at least 2 grid steps -> both v7x TensorCores get work (no effect on the
    # single-TC v5e/v6e parts).
    n8 = ((n + 7) // 8) * 8
    tm = min(tm, n8)
    if n8 >= 16:
        half = ((n8 // 2 + 7) // 8) * 8
        tm = min(tm, half)

    grid = (pl.cdiv(n, tm),)   # tail block handled by Pallas edge masking

    w1, t1 = kern_params["w1p"], kern_params["t1p"]
    w2, t2 = kern_params["w2p"], kern_params["t2p"]
    w3, b3 = kern_params["w3p"], kern_params["b3p"]

    flops = 2 * n * (IN_DIM * HIDDEN_PAD
                     + HIDDEN_PAD * HIDDEN_PAD
                     + HIDDEN_PAD * OUT_PAD)
    bytes_accessed = (n * IN_DIM * 4                      # f32 x streamed once
                      + w1.size * 2 + w2.size * 2 + w3.size * 2
                      + (t1.size + t2.size + b3.size) * 4
                      + n * OUT_PAD * 4)                  # narrow f32 output

    out = pl.pallas_call(
        netd_dc_kernel,
        out_shape=jax.ShapeDtypeStruct((n, OUT_PAD), jnp.float32),
        grid_spec=pltpu.PrefetchScalarGridSpec(
            num_scalar_prefetch=0,
            grid=grid,
            in_specs=[
                # Streamed f32 batch tiles (double-buffered by Pallas).
                pl.BlockSpec((tm, IN_DIM), lambda i: (i, 0)),
                # Weights / shifts: constant index_map -> VMEM resident, one DMA.
                pl.BlockSpec((IN_DIM, HIDDEN_PAD), lambda i: (0, 0)),
                pl.BlockSpec((1, HIDDEN_PAD), lambda i: (0, 0)),
                pl.BlockSpec((HIDDEN_PAD, HIDDEN_PAD), lambda i: (0, 0)),
                pl.BlockSpec((1, HIDDEN_PAD), lambda i: (0, 0)),
                pl.BlockSpec((HIDDEN_PAD, OUT_PAD), lambda i: (0, 0)),
                pl.BlockSpec((1, OUT_PAD), lambda i: (0, 0)),
            ],
            out_specs=pl.BlockSpec((tm, OUT_PAD), lambda i: (i, 0)),
        ),
        compiler_params=pltpu.CompilerParams(
            dimension_semantics=("parallel",),   # megacore-shard the batch axis
            # tm=1024 f32 x uses ~17 MiB (2x 8 MiB x bufs + weights); 48 MiB
            # leaves room for tm=2048 on v5e/v6e while staying < 64 MiB on v7x.
            vmem_limit_bytes=48 << 20,
        ),
        cost_estimate=pl.CostEstimate(
            flops=flops, transcendentals=0, bytes_accessed=bytes_accessed),
    )(x, w1, t1, w2, t2, w3, b3)

    return out[:, :NUM_CLASSES]


def init_params(key):
    """Deterministic synthetic params.

    Returns (ref_params, kern_params):
      ref_params  -- full-precision, unfolded (for the pure-JAX reference)
      kern_params -- BN-folded, zero-padded (128 hidden / 8 out), bf16 weights
    """
    ks = jax.random.split(key, 14)

    def linear(kw, kb, fan_in, fan_out):
        bound = 1.0 / math.sqrt(fan_in)
        w = jax.random.uniform(kw, (fan_in, fan_out), jnp.float32, -bound, bound)
        b = jax.random.uniform(kb, (fan_out,), jnp.float32, -bound, bound)
        return w, b

    w1, b1 = linear(ks[0], ks[1], IN_DIM, HIDDEN)
    w2, b2 = linear(ks[2], ks[3], HIDDEN, HIDDEN)
    w3, b3 = linear(ks[4], ks[5], HIDDEN, NUM_CLASSES)

    eps = 1e-5

    def bn_fold(kg, kbeta, km, kv, lin_bias, dim):
        gamma = 1.0 + 0.1 * jax.random.normal(kg, (dim,), jnp.float32)
        beta = 0.1 * jax.random.normal(kbeta, (dim,), jnp.float32)
        running_mean = 0.1 * jax.random.normal(km, (dim,), jnp.float32)
        running_var = jnp.abs(1.0 + 0.1 * jax.random.normal(kv, (dim,), jnp.float32))
        scale = gamma / jnp.sqrt(running_var + eps)
        # bn(linear(x)) = (x@W + b - mean)*scale + beta = x@(W*scale) + shift
        shift = (lin_bias - running_mean) * scale + beta
        return scale, shift

    s1, t1 = bn_fold(ks[6], ks[7], ks[8], ks[9], b1, HIDDEN)
    s2, t2 = bn_fold(ks[10], ks[11], ks[12], ks[13], b2, HIDDEN)

    ref_params = {"w1": w1, "s1": s1, "t1": t1,
                  "w2": w2, "s2": s2, "t2": t2,
                  "w3": w3, "b3": b3}

    # Fold BN scale into weight columns; zero-pad; bf16.  Padded rows/cols are
    # zero, so relu(0)=0 keeps padded lanes exactly zero through the stack.
    def pad2(a, rows, cols):
        return jnp.pad(a, ((0, rows - a.shape[0]), (0, cols - a.shape[1])))

    w1f = pad2(w1 * s1[None, :], IN_DIM, HIDDEN_PAD).astype(jnp.bfloat16)
    w2f = pad2(w2 * s2[None, :], HIDDEN_PAD, HIDDEN_PAD).astype(jnp.bfloat16)
    w3f = pad2(w3, HIDDEN_PAD, OUT_PAD).astype(jnp.bfloat16)
    t1f = jnp.pad(t1, (0, HIDDEN_PAD - HIDDEN)).reshape(1, HIDDEN_PAD)
    t2f = jnp.pad(t2, (0, HIDDEN_PAD - HIDDEN)).reshape(1, HIDDEN_PAD)
    b3f = jnp.pad(b3, (0, OUT_PAD - NUM_CLASSES)).reshape(1, OUT_PAD)

    kern_params = {"w1p": w1f, "t1p": t1f,
                   "w2p": w2f, "t2p": t2f,
                   "w3p": w3f, "b3p": b3f}
    return ref_params, kern_params


if __name__ == "__main__":
    key = jax.random.PRNGKey(0)
    k_x, k_p = jax.random.split(key)

    # batch=13: small, not a multiple of 8 or tm -> exercises the multi-step
    # grid (2 steps) and the masked tail-block path.
    batch = 13
    x = jax.random.normal(k_x, (batch, IN_DIM), jnp.float32)
    ref_params, kern_params = init_params(k_p)

    out = netd_dc_forward(x, kern_params)
    out = jax.block_until_ready(out)
    assert out.shape == (batch, NUM_CLASSES) and out.dtype == jnp.float32

    # Check 1 (tight): same bf16-folded weights, f32 accumulation, pure JAX.
    xb = x.astype(jnp.bfloat16)
    h = jnp.maximum(jnp.dot(xb, kern_params["w1p"],
                            preferred_element_type=jnp.float32)
                    + kern_params["t1p"], 0.0).astype(jnp.bfloat16)
    h = jnp.maximum(jnp.dot(h, kern_params["w2p"],
                            preferred_element_type=jnp.float32)
                    + kern_params["t2p"], 0.0).astype(jnp.bfloat16)
    ref_bf16 = (jnp.dot(h, kern_params["w3p"],
                        preferred_element_type=jnp.float32)
                + kern_params["b3p"])[:, :NUM_CLASSES]
    assert jnp.allclose(out, ref_bf16, atol=1e-3, rtol=1e-3)

    # Check 2 (loose, vs full-precision eval-mode semantics of netD_dc).
    r = jnp.maximum(x @ ref_params["w1"] * ref_params["s1"] + ref_params["t1"], 0.0)
    r = jnp.maximum(r @ ref_params["w2"] * ref_params["s2"] + ref_params["t2"], 0.0)
    r = r @ ref_params["w3"] + ref_params["b3"]
    assert jnp.allclose(out, r, atol=5e-2, rtol=5e-2)

    print("KERNEL_OK")
</pallas_src>

<mosaic_0001>
module attributes {stable_mosaic.version = 11 : i64} {
  func.func @netd_dc_kernel(%arg0: i32, %arg1: memref<8x2048xf32, #tpu.memory_space<vmem>>, %arg2: memref<2048x128xbf16, #tpu.memory_space<vmem>>, %arg3: memref<1x128xf32, #tpu.memory_space<vmem>>, %arg4: memref<128x128xbf16, #tpu.memory_space<vmem>>, %arg5: memref<1x128xf32, #tpu.memory_space<vmem>>, %arg6: memref<128x8xbf16, #tpu.memory_space<vmem>>, %arg7: memref<1x8xf32, #tpu.memory_space<vmem>>, %arg8: memref<8x8xf32, #tpu.memory_space<vmem>>) attributes {dimension_semantics = [#tpu.dimension_semantics<parallel>], iteration_bounds = array<i64: 2>, scalar_prefetch = 0 : i64, scratch_operands = 0 : i64, tpu.core_type = #tpu.core_type<tc>, window_params = [{transform_indices = @transform_0, window_bounds = array<i64: 8, 2048>}, {pipeline_mode = #tpu.pipeline_mode<synchronous>, transform_indices = @transform_1, window_bounds = array<i64: 2048, 128>}, {pipeline_mode = #tpu.pipeline_mode<synchronous>, transform_indices = @transform_2, window_bounds = array<i64: 1, 128>}, {pipeline_mode = #tpu.pipeline_mode<synchronous>, transform_indices = @transform_3, window_bounds = array<i64: 128, 128>}, {pipeline_mode = #tpu.pipeline_mode<synchronous>, transform_indices = @transform_4, window_bounds = array<i64: 1, 128>}, {pipeline_mode = #tpu.pipeline_mode<synchronous>, transform_indices = @transform_5, window_bounds = array<i64: 128, 8>}, {pipeline_mode = #tpu.pipeline_mode<synchronous>, transform_indices = @transform_6, window_bounds = array<i64: 1, 8>}, {transform_indices = @transform_7, window_bounds = array<i64: 8, 8>}]} {
    %c0 = arith.constant 0 : index
    %c0_0 = arith.constant 0 : index
    %0 = vector.load %arg1[%c0, %c0_0] : memref<8x2048xf32, #tpu.memory_space<vmem>>, vector<8x2048xf32>
    %1 = arith.truncf %0 : vector<8x2048xf32> to vector<8x2048xbf16>
    %c0_1 = arith.constant 0 : index
    %c0_2 = arith.constant 0 : index
    %2 = vector.load %arg2[%c0_1, %c0_2] : memref<2048x128xbf16, #tpu.memory_space<vmem>>, vector<2048x128xbf16>
    %cst = arith.constant dense<0.000000e+00> : vector<8x128xf32>
    %3 = tpu.matmul %1, %2, %cst {dimension_numbers = #tpu.dot_dimension_numbers<[1], [0], [0], [1], [0, 0, 1, 1], [], []>} : vector<8x2048xbf16>, vector<2048x128xbf16>, vector<8x128xf32> -> vector<8x128xf32>
    %c0_3 = arith.constant 0 : index
    %c0_4 = arith.constant 0 : index
    %4 = vector.load %arg3[%c0_3, %c0_4] : memref<1x128xf32, #tpu.memory_space<vmem>>, vector<1x128xf32>
    %5 = vector.broadcast %4 : vector<1x128xf32> to vector<8x128xf32>
    %6 = arith.addf %3, %5 : vector<8x128xf32>
    %cst_5 = arith.constant 0.000000e+00 : f32
    %7 = vector.broadcast %cst_5 : f32 to vector<8x128xf32>
    %8 = arith.maximumf %6, %7 : vector<8x128xf32>
    %9 = arith.truncf %8 : vector<8x128xf32> to vector<8x128xbf16>
    %c0_6 = arith.constant 0 : index
    %c0_7 = arith.constant 0 : index
    %10 = vector.load %arg4[%c0_6, %c0_7] : memref<128x128xbf16, #tpu.memory_space<vmem>>, vector<128x128xbf16>
    %cst_8 = arith.constant dense<0.000000e+00> : vector<8x128xf32>
    %11 = tpu.matmul %9, %10, %cst_8 {dimension_numbers = #tpu.dot_dimension_numbers<[1], [0], [0], [1], [0, 0, 1, 1], [], []>} : vector<8x128xbf16>, vector<128x128xbf16>, vector<8x128xf32> -> vector<8x128xf32>
    %c0_9 = arith.constant 0 : index
    %c0_10 = arith.constant 0 : index
    %12 = vector.load %arg5[%c0_9, %c0_10] : memref<1x128xf32, #tpu.memory_space<vmem>>, vector<1x128xf32>
    %13 = vector.broadcast %12 : vector<1x128xf32> to vector<8x128xf32>
    %14 = arith.addf %11, %13 : vector<8x128xf32>
    %cst_11 = arith.constant 0.000000e+00 : f32
    %15 = vector.broadcast %cst_11 : f32 to vector<8x128xf32>
    %16 = arith.maximumf %14, %15 : vector<8x128xf32>
    %17 = arith.truncf %16 : vector<8x128xf32> to vector<8x128xbf16>
    %c0_12 = arith.constant 0 : index
    %c0_13 = arith.constant 0 : index
    %18 = vector.load %arg6[%c0_12, %c0_13] : memref<128x8xbf16, #tpu.memory_space<vmem>>, vector<128x8xbf16>
    %cst_14 = arith.constant dense<0.000000e+00> : vector<8x8xf32>
    %19 = tpu.matmul %17, %18, %cst_14 {dimension_numbers = #tpu.dot_dimension_numbers<[1], [0], [0], [1], [0, 0, 1, 1], [], []>} : vector<8x128xbf16>, vector<128x8xbf16>, vector<8x8xf32> -> vector<8x8xf32>
    %c0_15 = arith.constant 0 : index
    %c0_16 = arith.constant 0 : index
    %20 = vector.load %arg7[%c0_15, %c0_16] : memref<1x8xf32, #tpu.memory_space<vmem>>, vector<1x8xf32>
    %21 = vector.broadcast %20 : vector<1x8xf32> to vector<8x8xf32>
    %22 = arith.addf %19, %21 : vector<8x8xf32>
    %c0_17 = arith.constant 0 : index
    %c0_18 = arith.constant 0 : index
    %23 = vector.load %arg8[%c0_17, %c0_18] : memref<8x8xf32, #tpu.memory_space<vmem>>, vector<8x8xf32>
    tpu.vector_store %arg8[%c0_17, %c0_18], %22 {strides = array<i32>} : memref<8x8xf32, #tpu.memory_space<vmem>>, vector<8x8xf32>,
    return
  }
  func.func @transform_0(%arg0: i32) -> (i32, i32) {
    %c0_i32 = arith.constant 0 : i32
    %c0_i32_0 = arith.constant 0 : i32
    return %arg0, %c0_i32 : i32, i32
  }
  func.func @transform_1(%arg0: i32) -> (i32, i32) {
    %c0_i32 = arith.constant 0 : i32
    %c0_i32_0 = arith.constant 0 : i32
    %c0_i32_1 = arith.constant 0 : i32
    return %c0_i32, %c0_i32_0 : i32, i32
  }
  func.func @transform_2(%arg0: i32) -> (i32, i32) {
    %c0_i32 = arith.constant 0 : i32
    %c0_i32_0 = arith.constant 0 : i32
    %c0_i32_1 = arith.constant 0 : i32
    return %c0_i32, %c0_i32_0 : i32, i32
  }
  func.func @transform_3(%arg0: i32) -> (i32, i32) {
    %c0_i32 = arith.constant 0 : i32
    %c0_i32_0 = arith.constant 0 : i32
    %c0_i32_1 = arith.constant 0 : i32
    return %c0_i32, %c0_i32_0 : i32, i32
  }
  func.func @transform_4(%arg0: i32) -> (i32, i32) {
    %c0_i32 = arith.constant 0 : i32
    %c0_i32_0 = arith.constant 0 : i32
    %c0_i32_1 = arith.constant 0 : i32
    return %c0_i32, %c0_i32_0 : i32, i32
  }
  func.func @transform_5(%arg0: i32) -> (i32, i32) {
    %c0_i32 = arith.constant 0 : i32
    %c0_i32_0 = arith.constant 0 : i32
    %c0_i32_1 = arith.constant 0 : i32
    return %c0_i32, %c0_i32_0 : i32, i32
  }
  func.func @transform_6(%arg0: i32) -> (i32, i32) {
    %c0_i32 = arith.constant 0 : i32
    %c0_i32_0 = arith.constant 0 : i32
    %c0_i32_1 = arith.constant 0 : i32
    return %c0_i32, %c0_i32_0 : i32, i32
  }
  func.func @transform_7(%arg0: i32) -> (i32, i32) {
    %c0_i32 = arith.constant 0 : i32
    %c0_i32_0 = arith.constant 0 : i32
    return %arg0, %c0_i32 : i32, i32
  }
}

</mosaic_0001>

<llo_original>
// kernel: tpu_custom_call.1
$region0: #{tpu_custom_call.1}
  #allocation0 [shape = 'u32[]', space=smem, size = 0x4, offset = 0x4, fixed_abs, tag = 'smem constant byte address 0x4 - core index']
  #allocation1 [shape = 'u32[72,128]{1,0:T(1,128)}', space=vmem, size = 0x9000, scoped, tag = 'internal scratch']
  %s0 = inlined_call_operand.hbm [shape: f32[13,2048], index: 0, kind: input, shape index: {}]
  %s1 = inlined_call_operand.hbm [shape: bf16[2048,128], index: 1, kind: input, shape index: {}]
  %s2 = inlined_call_operand.vmem [shape: f32[1,128], index: 2, kind: input, shape index: {}]
  %s3 = inlined_call_operand.vmem [shape: bf16[128,128], index: 3, kind: input, shape index: {}]
  %s4 = inlined_call_operand.vmem [shape: f32[1,128], index: 4, kind: input, shape index: {}]
  %s5 = inlined_call_operand.vmem [shape: bf16[128,8], index: 5, kind: input, shape index: {}]
  %s6 = inlined_call_operand.vmem [shape: f32[1,8], index: 6, kind: input, shape index: {}]
  %s7 = inlined_call_operand.vmem [shape: f32[13,8], index: 7, kind: output, shape index: {}]
  %s8 = sld [smem:[#allocation0]]
  $region69: #{tpu_custom_call.1} parent=0
    _
  %s10 = ssub.s32 1, %s8
  %s11 = scalar_select 0, %s10, %s8
  $region1: #{tpu_custom_call.1} parent=0
    #allocation2 [shape = 'u8[131072]{0}', space=vmem, size = 0x20000, scoped, tag = 'input window, operand 0']
    #allocation3 [shape = 's32[2]{0}', space=sflag, size = 0x8, scoped, tag = 'scoped memory for tpu_custom_call.1']
    #allocation4 [shape = 'u8[524288]{0}', space=vmem, size = 0x80000, scoped, tag = 'input window, operand 1, single buffered']
    #allocation5 [shape = 's32[1]{0}', space=sflag, size = 0x4, scoped, tag = 'scoped memory for tpu_custom_call.1']
    %12 = vsyncpa [#allocation3], 0
    %s13 = scalar_lea.sflag [#allocation3], 1
    %14 = vsyncpa %s13, 0
    %15 = vsyncpa [#allocation5], 0
    loop: start=0, step=1, limit=4
    $region2: #{tpu_custom_call.1} parent=1 // loop_pre_header
      _
    $region3: #{tpu_custom_call.1} parent=1 // loop_header
      %s17 = sphi 0, %s21
      %p18 = scmp.ge.s32.totalorder %s17, 4
      %s27 = sphi 0, %s29
      %s30 = sphi 0, %s27
      %s31 = sphi 0, %s30
      %s47 = sphi 0, %s31
      %s51 = sphi 0, %s51
      %s53 = sphi 0, %s51
      %s54 = sphi 0, %s53
      %s68 = sphi 0, %s54
      %s72 = sphi 0, %s72
      %s74 = sphi 0, %s72
      %s75 = sphi 0, %s74
      %s89 = sphi 0, %s75
      %s93 = sphi 0, %s93
      %s95 = sphi 0, %s93
      %s96 = sphi 0, %s95
      %s110 = sphi 0, %s96
      %s114 = sphi 0, %s114
      %s116 = sphi 0, %s114
      %s117 = sphi 0, %s116
      %s131 = sphi 0, %s117
      %s135 = sphi 0, %s135
      %s137 = sphi 0, %s135
      %s138 = sphi 0, %s137
      %s152 = sphi 0, %s138
      %s156 = sphi 0, %s156
      %s158 = sphi 0, %s156
      %s159 = sphi 0, %s158
      %s173 = sphi 0, %s159
      %s179 = sphi 0, %s181
      %s182 = sphi 0, %s179
      %s183 = sphi 0, %s182
      %s199 = sphi 0, %s183
    $region4: #{tpu_custom_call.1} parent=1 // loop_header_branch
      %20 = sbr.rel (%p18) target = $region8
    $region5: #{tpu_custom_call.1} parent=1 // loop_body
      %s22 = ssub.s32 %s17, 1
      %s23 = ssub.s32 %s17, 2
      %s24 = sadd.s32 %s17, 1
      %s25 = ssub.s32 %s17, %s24
      %p26 = scmp.eq.s32.totalorder %s25, 0
      %s28 = sadd.s32 %s27, 1
      %s29 = scalar_select %p26, %s27, %s28
      %p32 = pneg %p26
      %p33 = scmp.eq.s32.totalorder %s17, 1
      %p34 = por %p32, %p33
      %p35 = scmp.ne.s32.totalorder %s27, %s30
      %p36 = scmp.eq.s32.totalorder %s17, 0
      %p37 = por %p35, %p36
      %p38 = scmp.ne.s32.totalorder %s27, %s30
      %p39 = scmp.eq.s32.totalorder %s22, 1
      %p40 = por %p38, %p39
      %p41 = scmp.ne.s32.totalorder %s30, %s31
      %p42 = scmp.eq.s32.totalorder %s22, 0
      %p43 = por %p41, %p42
      %p44 = scmp.ne.s32.totalorder %s30, %s31
      %p45 = scmp.eq.s32.totalorder %s23, 1
      %p46 = por %p44, %p45
      %p48 = scmp.ne.s32.totalorder %s31, %s47
      %p49 = scmp.eq.s32.totalorder %s23, 0
      %p50 = por %p48, %p49
      %s52 = sadd.s32 %s51, 1
      %p55 = scmp.eq.s32.totalorder %s17, 1
      %p56 = scmp.ne.s32.totalorder %s51, %s53
      %p57 = scmp.eq.s32.totalorder %s17, 0
      %p58 = por %p56, %p57
      %p59 = scmp.ne.s32.totalorder %s51, %s53
      %p60 = scmp.eq.s32.totalorder %s22, 1
      %p61 = por %p59, %p60
      %p62 = scmp.ne.s32.totalorder %s53, %s54
      %p63 = scmp.eq.s32.totalorder %s22, 0
      %p64 = por %p62, %p63
      %p65 = scmp.ne.s32.totalorder %s53, %s54
      %p66 = scmp.eq.s32.totalorder %s23, 1
      %p67 = por %p65, %p66
      %p69 = scmp.ne.s32.totalorder %s54, %s68
      %p70 = scmp.eq.s32.totalorder %s23, 0
      %p71 = por %p69, %p70
      %s73 = sadd.s32 %s72, 1
      %p76 = scmp.eq.s32.totalorder %s17, 1
      %p77 = scmp.ne.s32.totalorder %s72, %s74
      %p78 = scmp.eq.s32.totalorder %s17, 0
      %p79 = por %p77, %p78
      %p80 = scmp.ne.s32.totalorder %s72, %s74
      %p81 = scmp.eq.s32.totalorder %s22, 1
      %p82 = por %p80, %p81
      %p83 = scmp.ne.s32.totalorder %s74, %s75
      %p84 = scmp.eq.s32.totalorder %s22, 0
      %p85 = por %p83, %p84
      %p86 = scmp.ne.s32.totalorder %s74, %s75
      %p87 = scmp.eq.s32.totalorder %s23, 1
      %p88 = por %p86, %p87
      %p90 = scmp.ne.s32.totalorder %s75, %s89
      %p91 = scmp.eq.s32.totalorder %s23, 0
      %p92 = por %p90, %p91
      %s94 = sadd.s32 %s93, 1
      %p97 = scmp.eq.s32.totalorder %s17, 1
      %p98 = scmp.ne.s32.totalorder %s93, %s95
      %p99 = scmp.eq.s32.totalorder %s17, 0
      %p100 = por %p98, %p99
      %p101 = scmp.ne.s32.totalorder %s93, %s95
      %p102 = scmp.eq.s32.totalorder %s22, 1
      %p103 = por %p101, %p102
      %p104 = scmp.ne.s32.totalorder %s95, %s96
      %p105 = scmp.eq.s32.totalorder %s22, 0
      %p106 = por %p104, %p105
      %p107 = scmp.ne.s32.totalorder %s95, %s96
      %p108 = scmp.eq.s32.totalorder %s23, 1
      %p109 = por %p107, %p108
      %p111 = scmp.ne.s32.totalorder %s96, %s110
      %p112 = scmp.eq.s32.totalorder %s23, 0
      %p113 = por %p111, %p112
      %s115 = sadd.s32 %s114, 1
      %p118 = scmp.eq.s32.totalorder %s17, 1
      %p119 = scmp.ne.s32.totalorder %s114, %s116
      %p120 = scmp.eq.s32.totalorder %s17, 0
      %p121 = por %p119, %p120
      %p122 = scmp.ne.s32.totalorder %s114, %s116
      %p123 = scmp.eq.s32.totalorder %s22, 1
      %p124 = por %p122, %p123
      %p125 = scmp.ne.s32.totalorder %s116, %s117
      %p126 = scmp.eq.s32.totalorder %s22, 0
      %p127 = por %p125, %p126
      %p128 = scmp.ne.s32.totalorder %s116, %s117
      %p129 = scmp.eq.s32.totalorder %s23, 1
      %p130 = por %p128, %p129
      %p132 = scmp.ne.s32.totalorder %s117, %s131
      %p133 = scmp.eq.s32.totalorder %s23, 0
      %p134 = por %p132, %p133
      %s136 = sadd.s32 %s135, 1
      %p139 = scmp.eq.s32.totalorder %s17, 1
      %p140 = scmp.ne.s32.totalorder %s135, %s137
      %p141 = scmp.eq.s32.totalorder %s17, 0
      %p142 = por %p140, %p141
      %p143 = scmp.ne.s32.totalorder %s135, %s137
      %p144 = scmp.eq.s32.totalorder %s22, 1
      %p145 = por %p143, %p144
      %p146 = scmp.ne.s32.totalorder %s137, %s138
      %p147 = scmp.eq.s32.totalorder %s22, 0
      %p148 = por %p146, %p147
      %p149 = scmp.ne.s32.totalorder %s137, %s138
      %p150 = scmp.eq.s32.totalorder %s23, 1
      %p151 = por %p149, %p150
      %p153 = scmp.ne.s32.totalorder %s138, %s152
      %p154 = scmp.eq.s32.totalorder %s23, 0
      %p155 = por %p153, %p154
      %s157 = sadd.s32 %s156, 1
      %p160 = scmp.eq.s32.totalorder %s17, 1
      %p161 = scmp.ne.s32.totalorder %s156, %s158
      %p162 = scmp.eq.s32.totalorder %s17, 0
      %p163 = por %p161, %p162
      %p164 = scmp.ne.s32.totalorder %s156, %s158
      %p165 = scmp.eq.s32.totalorder %s22, 1
      %p166 = por %p164, %p165
      %p167 = scmp.ne.s32.totalorder %s158, %s159
      %p168 = scmp.eq.s32.totalorder %s22, 0
      %p169 = por %p167, %p168
      %p170 = scmp.ne.s32.totalorder %s158, %s159
      %p171 = scmp.eq.s32.totalorder %s23, 1
      %p172 = por %p170, %p171
      %p174 = scmp.ne.s32.totalorder %s159, %s173
      %p175 = scmp.eq.s32.totalorder %s23, 0
      %p176 = por %p174, %p175
      %s177 = ssub.s32 %s17, %s24
      %p178 = scmp.eq.s32.totalorder %s177, 0
      %s180 = sadd.s32 %s179, 1
      %s181 = scalar_select %p178, %s179, %s180
      %p184 = pneg %p178
      %p185 = scmp.eq.s32.totalorder %s17, 1
      %p186 = por %p184, %p185
      %p187 = scmp.ne.s32.totalorder %s179, %s182
      %p188 = scmp.eq.s32.totalorder %s17, 0
      %p189 = por %p187, %p188
      %p190 = scmp.ne.s32.totalorder %s179, %s182
      %p191 = scmp.eq.s32.totalorder %s22, 1
      %p192 = por %p190, %p191
      %p193 = scmp.ne.s32.totalorder %s182, %s183
      %p194 = scmp.eq.s32.totalorder %s22, 0
      %p195 = por %p193, %p194
      %p196 = scmp.ne.s32.totalorder %s182, %s183
      %p197 = scmp.eq.s32.totalorder %s23, 1
      %p198 = por %p196, %p197
      %p200 = scmp.ne.s32.totalorder %s183, %s199
      %p201 = scmp.eq.s32.totalorder %s23, 0
      %p202 = por %p200, %p201
      %p203 = scmp.le.s32.totalorder 1, %s17
      %p204 = scmp.lt.s32.totalorder %s17, 3
      %p205 = pnand %p203, %p204
      %p206 = pneg %p205
      // Predicated region
      $region9: #{tpu_custom_call.1} parent=5 // pred_check
        _
      $region10: #{tpu_custom_call.1} parent=5 // pred_check_branch
        %208 = sbr.rel (%p205) target = $region12
      $region11: #{tpu_custom_call.1} parent=5 // pred_region
        %s209 = ssub.s32 %s17, 1
        // Predicated region
        $region13: #{tpu_custom_call.1} parent=11 // pred_check
          %p210 = pneg %p64
        $region14: #{tpu_custom_call.1} parent=11 // pred_check_branch
          %212 = sbr.rel (%p210) target = $region16
        $region15: #{tpu_custom_call.1} parent=11 // pred_region
          %214 = vsyncadd [#allocation5], 0
          %s215 = sshll.u32 %s1, 4
          %s216 = int_to_ptr.hbm [resolvable:$true] %s215
          %s217 = sshll.u32 [#allocation4], 4
          %s218 = int_to_ptr.vmem [resolvable:$true] %s217
          %223 = dma.hbm_to_vmem [thread:$0]  %s216, 16384, %s218, [#allocation5], 64, 64, 4
        $region16: #{tpu_custom_call.1} parent=11 // pred_fallthru
          _
        // Predicated region
        $region17: #{tpu_custom_call.1} parent=11 // pred_check
          %p224 = pneg %p85
        $region18: #{tpu_custom_call.1} parent=11 // pred_check_branch
          %226 = sbr.rel (%p224) target = $region20
        $region19: #{tpu_custom_call.1} parent=11 // pred_region
          _
        $region20: #{tpu_custom_call.1} parent=11 // pred_fallthru
          _
        // Predicated region
        $region21: #{tpu_custom_call.1} parent=11 // pred_check
          %p227 = pneg %p106
        $region22: #{tpu_custom_call.1} parent=11 // pred_check_branch
          %229 = sbr.rel (%p227) target = $region24
        $region23: #{tpu_custom_call.1} parent=11 // pred_region
          _
        $region24: #{tpu_custom_call.1} parent=11 // pred_fallthru
          _
        // Predicated region
        $region25: #{tpu_custom_call.1} parent=11 // pred_check
          %p230 = pneg %p127
        $region26: #{tpu_custom_call.1} parent=11 // pred_check_branch
          %232 = sbr.rel (%p230) target = $region28
        $region27: #{tpu_custom_call.1} parent=11 // pred_region
          _
        $region28: #{tpu_custom_call.1} parent=11 // pred_fallthru
          _
        // Predicated region
        $region29: #{tpu_custom_call.1} parent=11 // pred_check
          %p233 = pneg %p148
        $region30: #{tpu_custom_call.1} parent=11 // pred_check_branch
          %235 = sbr.rel (%p233) target = $region32
        $region31: #{tpu_custom_call.1} parent=11 // pred_region
          _
        $region32: #{tpu_custom_call.1} parent=11 // pred_fallthru
          _
        // Predicated region
        $region33: #{tpu_custom_call.1} parent=11 // pred_check
          %p236 = pneg %p169
        $region34: #{tpu_custom_call.1} parent=11 // pred_check_branch
          %238 = sbr.rel (%p236) target = $region36
        $region35: #{tpu_custom_call.1} parent=11 // pred_region
          _
        $region36: #{tpu_custom_call.1} parent=11 // pred_fallthru
          _
      $region12: #{tpu_custom_call.1} parent=5 // pred_fallthru
        _
      %p239 = scmp.lt.s32.totalorder %s17, 2
      // Predicated region
      $region37: #{tpu_custom_call.1} parent=5 // pred_check
        %p240 = pneg %p239
      $region38: #{tpu_custom_call.1} parent=5 // pred_check_branch
        %242 = sbr.rel (%p240) target = $region40
      $region39: #{tpu_custom_call.1} parent=5 // pred_region
        // Predicated region
        $region41: #{tpu_custom_call.1} parent=39 // pred_check
          %p243 = pneg %p37
        $region42: #{tpu_custom_call.1} parent=39 // pred_check_branch
          %245 = sbr.rel (%p243) target = $region44
        $region43: #{tpu_custom_call.1} parent=39 // pred_region
          %s246 = sand.u32 %s27, 1
          %s247 = scalar_lea.sflag [#allocation3], %s246
          %s248 = sand.u32 %s27, 1
          %s249 = smul.addr %s248, 128
          %s250 = scalar_lea.vmem [#allocation2], %s249
          %252 = vsyncadd %s247, 0
          %s253 = smul.addr %s17, 16
          %s254 = smul.addr %s253, 8
          %s255 = scalar_lea.hbm %s0, %s254
          %s257 = sshll.u32 %s255, 4
          %s258 = int_to_ptr.hbm [resolvable:$true] %s257
          %s259 = sshll.u32 %s250, 4
          %s260 = int_to_ptr.vmem [resolvable:$true] %s259
          %262 = dma.hbm_to_vmem [thread:$0]  %s258, 2048, %s260, %s247
        $region44: #{tpu_custom_call.1} parent=39 // pred_fallthru
          _
      $region40: #{tpu_custom_call.1} parent=5 // pred_fallthru
        _
      %p263 = scmp.le.s32.totalorder 1, %s17
      %p264 = scmp.lt.s32.totalorder %s17, 3
      %p265 = pnand %p263, %p264
      %p266 = pneg %p265
      // Predicated region
      $region45: #{tpu_custom_call.1} parent=5 // pred_check
        _
      $region46: #{tpu_custom_call.1} parent=5 // pred_check_branch
        %268 = sbr.rel (%p265) target = $region48
      $region47: #{tpu_custom_call.1} parent=5 // pred_region
        %s269 = ssub.s32 %s17, 1
        %s270 = sand.u32 %s30, 1
        %s271 = scalar_lea.sflag [#allocation3], %s270
        %s272 = sand.u32 %s30, 1
        %s273 = smul.addr %s272, 128
        %s274 = scalar_lea.vmem [#allocation2], %s273
        // Predicated region
        $region49: #{tpu_custom_call.1} parent=47 // pred_check
          %p275 = pneg %p43
        $region50: #{tpu_custom_call.1} parent=47 // pred_check_branch
          %277 = sbr.rel (%p275) target = $region52
        $region51: #{tpu_custom_call.1} parent=47 // pred_region
          %279 = dma.done %s271, 2048
        $region52: #{tpu_custom_call.1} parent=47 // pred_fallthru
          _
        // Predicated region
        $region53: #{tpu_custom_call.1} parent=47 // pred_check
          %p280 = pneg %p64
        $region54: #{tpu_custom_call.1} parent=47 // pred_check_branch
          %282 = sbr.rel (%p280) target = $region56
        $region55: #{tpu_custom_call.1} parent=47 // pred_region
          %284 = dma.done [#allocation5], 16384
        $region56: #{tpu_custom_call.1} parent=47 // pred_fallthru
          _
        %s285 = sand.u32 %s30, 1
        %s286 = scalar_lea.sflag [#allocation3], %s285
        %s287 = sand.u32 %s30, 1
        %s288 = smul.addr %s287, 128
        %s289 = scalar_lea.vmem [#allocation2], %s288
        %p290 = pneg %p43
        %p291 = pneg %p40
        %p292 = pneg %p64
        %p293 = pneg %p61
        %p294 = pneg %p85
        %p295 = pneg %p82
        %p296 = pneg %p106
        %p297 = pneg %p103
        %p298 = pneg %p127
        %p299 = pneg %p124
        %p300 = pneg %p148
        %p301 = pneg %p145
        %p302 = pneg %p169
        %p303 = pneg %p166
        %p304 = pneg %p195
        %p305 = pneg %p192
        %p306 = scmp.lt.s32.totalorder %s22, 1
        %s307 = scalar_select %p306, %s22, 1
        %s308 = smul.addr %s307, 8
        %s309 = scalar_lea.vmem %s7, %s308
        %p310 = scmp.lt.s32.totalorder %s22, 1
        %s311 = scalar_select %p310, %s22, 1
        %s312 = smul.addr %s311, 8
        %s313 = scalar_lea.vmem %s7, %s312
        %v314 = vld [vmem:[%s274] sm:$0xff]
        %v315 = vld [vmem:[%s274 + $0x8] sm:$0xff]
        %v316 = vld [vmem:[%s274 + $0x10] sm:$0xff]
        %v317 = vld [vmem:[%s274 + $0x18] sm:$0xff]
        %v318 = vld [vmem:[%s274 + $0x20] sm:$0xff]
        %v319 = vld [vmem:[%s274 + $0x28] sm:$0xff]
        %v320 = vld [vmem:[%s274 + $0x30] sm:$0xff]
        %v321 = vld [vmem:[%s274 + $0x38] sm:$0xff]
        %v322 = vld [vmem:[%s274 + $0x40] sm:$0xff]
        %v323 = vld [vmem:[%s274 + $0x48] sm:$0xff]
        %v324 = vld [vmem:[%s274 + $0x50] sm:$0xff]
        %v325 = vld [vmem:[%s274 + $0x58] sm:$0xff]
        %v326 = vld [vmem:[%s274 + $0x60] sm:$0xff]
        %v327 = vld [vmem:[%s274 + $0x68] sm:$0xff]
        %v328 = vld [vmem:[%s274 + $0x70] sm:$0xff]
        %v329 = vld [vmem:[%s274 + $0x78] sm:$0xff]
        %v330 = vpack.c.bf16 %v314, %v314
        %v331 = vpack.c.bf16 %v315, %v315
        %v332 = vpack.c.bf16 %v316, %v316
        %v333 = vpack.c.bf16 %v317, %v317
        %v334 = vpack.c.bf16 %v318, %v318
        %v335 = vpack.c.bf16 %v319, %v319
        %v336 = vpack.c.bf16 %v320, %v320
        %v337 = vpack.c.bf16 %v321, %v321
        %v338 = vpack.c.bf16 %v322, %v322
        %v339 = vpack.c.bf16 %v323, %v323
        %v340 = vpack.c.bf16 %v324, %v324
        %v341 = vpack.c.bf16 %v325, %v325
        %v342 = vpack.c.bf16 %v326, %v326
        %v343 = vpack.c.bf16 %v327, %v327
        %v344 = vpack.c.bf16 %v328, %v328
        %v345 = vpack.c.bf16 %v329, %v329
        %v346 = vld [vmem:[#allocation4] sm:$0xf]
        %v347 = vld [vmem:[#allocation4 + $0x4] sm:$0xf]
        %v348 = vld [vmem:[#allocation4 + $0x8] sm:$0xf]
        %v349 = vld [vmem:[#allocation4 + $0xc] sm:$0xf]
        %v350 = vld [vmem:[#allocation4 + $0x10] sm:$0xf]
        %v351 = vld [vmem:[#allocation4 + $0x14] sm:$0xf]
        %v352 = vld [vmem:[#allocation4 + $0x18] sm:$0xf]
        %v353 = vld [vmem:[#allocation4 + $0x1c] sm:$0xf]
        %v354 = vld [vmem:[#allocation4 + $0x20] sm:$0xf]
        %v355 = vld [vmem:[#allocation4 + $0x24] sm:$0xf]
        %v356 = vld [vmem:[#allocation4 + $0x28] sm:$0xf]
        %v357 = vld [vmem:[#allocation4 + $0x2c] sm:$0xf]
        %v358 = vld [vmem:[#allocation4 + $0x30] sm:$0xf]
        %v359 = vld [vmem:[#allocation4 + $0x34] sm:$0xf]
        %v360 = vld [vmem:[#allocation4 + $0x38] sm:$0xf]
        %v361 = vld [vmem:[#allocation4 + $0x3c] sm:$0xf]
        %v362 = vld [vmem:[#allocation4 + $0x40] sm:$0xf]
        %v363 = vld [vmem:[#allocation4 + $0x44] sm:$0xf]
        %v364 = vld [vmem:[#allocation4 + $0x48] sm:$0xf]
        %v365 = vld [vmem:[#allocation4 + $0x4c] sm:$0xf]
        %v366 = vld [vmem:[#allocation4 + $0x50] sm:$0xf]
        %v367 = vld [vmem:[#allocation4 + $0x54] sm:$0xf]
        %v368 = vld [vmem:[#allocation4 + $0x58] sm:$0xf]
        %v369 = vld [vmem:[#allocation4 + $0x5c] sm:$0xf]
        %v370 = vld [vmem:[#allocation4 + $0x60] sm:$0xf]
        %v371 = vld [vmem:[#allocation4 + $0x64] sm:$0xf]
        %v372 = vld [vmem:[#allocation4 + $0x68] sm:$0xf]
        %v373 = vld [vmem:[#allocation4 + $0x6c] sm:$0xf]
        %v374 = vld [vmem:[#allocation4 + $0x70] sm:$0xf]
        %v375 = vld [vmem:[#allocation4 + $0x74] sm:$0xf]
        %v376 = vld [vmem:[#allocation4 + $0x78] sm:$0xf]
        %v377 = vld [vmem:[#allocation4 + $0x7c] sm:$0xf]
        %v378 = vld [vmem:[#allocation4 + $0x80] sm:$0xf]
        %v379 = vld [vmem:[#allocation4 + $0x84] sm:$0xf]
        %v380 = vld [vmem:[#allocation4 + $0x88] sm:$0xf]
        %v381 = vld [vmem:[#allocation4 + $0x8c] sm:$0xf]
        %v382 = vld [vmem:[#allocation4 + $0x90] sm:$0xf]
        %v383 = vld [vmem:[#allocation4 + $0x94] sm:$0xf]
        %v384 = vld [vmem:[#allocation4 + $0x98] sm:$0xf]
        %v385 = vld [vmem:[#allocation4 + $0x9c] sm:$0xf]
        %v386 = vld [vmem:[#allocation4 + $0xa0] sm:$0xf]
        %v387 = vld [vmem:[#allocation4 + $0xa4] sm:$0xf]
        %v388 = vld [vmem:[#allocation4 + $0xa8] sm:$0xf]
        %v389 = vld [vmem:[#allocation4 + $0xac] sm:$0xf]
        %v390 = vld [vmem:[#allocation4 + $0xb0] sm:$0xf]
        %v391 = vld [vmem:[#allocation4 + $0xb4] sm:$0xf]
        %v392 = vld [vmem:[#allocation4 + $0xb8] sm:$0xf]
        %v393 = vld [vmem:[#allocation4 + $0xbc] sm:$0xf]
        %v394 = vld [vmem:[#allocation4 + $0xc0] sm:$0xf]
        %v395 = vld [vmem:[#allocation4 + $0xc4] sm:$0xf]
        %v396 = vld [vmem:[#allocation4 + $0xc8] sm:$0xf]
        %v397 = vld [vmem:[#allocation4 + $0xcc] sm:$0xf]
        %v398 = vld [vmem:[#allocation4 + $0xd0] sm:$0xf]
        %v399 = vld [vmem:[#allocation4 + $0xd4] sm:$0xf]
        %v400 = vld [vmem:[#allocation4 + $0xd8] sm:$0xf]
        %v401 = vld [vmem:[#allocation4 + $0xdc] sm:$0xf]
        %v402 = vld [vmem:[#allocation4 + $0xe0] sm:$0xf]
        %v403 = vld [vmem:[#allocation4 + $0xe4] sm:$0xf]
        %v404 = vld [vmem:[#allocation4 + $0xe8] sm:$0xf]
        %v405 = vld [vmem:[#allocation4 + $0xec] sm:$0xf]
        %v406 = vld [vmem:[#allocation4 + $0xf0] sm:$0xf]
        %v407 = vld [vmem:[#allocation4 + $0xf4] sm:$0xf]
        %v408 = vld [vmem:[#allocation4 + $0xf8] sm:$0xf]
        %v409 = vld [vmem:[#allocation4 + $0xfc] sm:$0xf]
        %v410 = vld [vmem:[#allocation4 + $0x100] sm:$0xf]
        %v411 = vld [vmem:[#allocation4 + $0x104] sm:$0xf]
        %v412 = vld [vmem:[#allocation4 + $0x108] sm:$0xf]
        %v413 = vld [vmem:[#allocation4 + $0x10c] sm:$0xf]
        %v414 = vld [vmem:[#allocation4 + $0x110] sm:$0xf]
        %v415 = vld [vmem:[#allocation4 + $0x114] sm:$0xf]
        %v416 = vld [vmem:[#allocation4 + $0x118] sm:$0xf]
        %v417 = vld [vmem:[#allocation4 + $0x11c] sm:$0xf]
        %v418 = vld [vmem:[#allocation4 + $0x120] sm:$0xf]
        %v419 = vld [vmem:[#allocation4 + $0x124] sm:$0xf]
        %v420 = vld [vmem:[#allocation4 + $0x128] sm:$0xf]
        %v421 = vld [vmem:[#allocation4 + $0x12c] sm:$0xf]
        %v422 = vld [vmem:[#allocation4 + $0x130] sm:$0xf]
        %v423 = vld [vmem:[#allocation4 + $0x134] sm:$0xf]
        %v424 = vld [vmem:[#allocation4 + $0x138] sm:$0xf]
        %v425 = vld [vmem:[#allocation4 + $0x13c] sm:$0xf]
        %v426 = vld [vmem:[#allocation4 + $0x140] sm:$0xf]
        %v427 = vld [vmem:[#allocation4 + $0x144] sm:$0xf]
        %v428 = vld [vmem:[#allocation4 + $0x148] sm:$0xf]
        %v429 = vld [vmem:[#allocation4 + $0x14c] sm:$0xf]
        %v430 = vld [vmem:[#allocation4 + $0x150] sm:$0xf]
        %v431 = vld [vmem:[#allocation4 + $0x154] sm:$0xf]
        %v432 = vld [vmem:[#allocation4 + $0x158] sm:$0xf]
        %v433 = vld [vmem:[#allocation4 + $0x15c] sm:$0xf]
        %v434 = vld [vmem:[#allocation4 + $0x160] sm:$0xf]
        %v435 = vld [vmem:[#allocation4 + $0x164] sm:$0xf]
        %v436 = vld [vmem:[#allocation4 + $0x168] sm:$0xf]
        %v437 = vld [vmem:[#allocation4 + $0x16c] sm:$0xf]
        %v438 = vld [vmem:[#allocation4 + $0x170] sm:$0xf]
        %v439 = vld [vmem:[#allocation4 + $0x174] sm:$0xf]
        %v440 = vld [vmem:[#allocation4 + $0x178] sm:$0xf]
        %v441 = vld [vmem:[#allocation4 + $0x17c] sm:$0xf]
        %v442 = vld [vmem:[#allocation4 + $0x180] sm:$0xf]
        %v443 = vld [vmem:[#allocation4 + $0x184] sm:$0xf]
        %v444 = vld [vmem:[#allocation4 + $0x188] sm:$0xf]
        %v445 = vld [vmem:[#allocation4 + $0x18c] sm:$0xf]
        %v446 = vld [vmem:[#allocation4 + $0x190] sm:$0xf]
        %v447 = vld [vmem:[#allocation4 + $0x194] sm:$0xf]
        %v448 = vld [vmem:[#allocation4 + $0x198] sm:$0xf]
        %v449 = vld [vmem:[#allocation4 + $0x19c] sm:$0xf]
        %v450 = vld [vmem:[#allocation4 + $0x1a0] sm:$0xf]
        %v451 = vld [vmem:[#allocation4 + $0x1a4] sm:$0xf]
        %v452 = vld [vmem:[#allocation4 + $0x1a8] sm:$0xf]
        %v453 = vld [vmem:[#allocation4 + $0x1ac] sm:$0xf]
        %v454 = vld [vmem:[#allocation4 + $0x1b0] sm:$0xf]
        %v455 = vld [vmem:[#allocation4 + $0x1b4] sm:$0xf]
        %v456 = vld [vmem:[#allocation4 + $0x1b8] sm:$0xf]
        %v457 = vld [vmem:[#allocation4 + $0x1bc] sm:$0xf]
        %v458 = vld [vmem:[#allocation4 + $0x1c0] sm:$0xf]
        %v459 = vld [vmem:[#allocation4 + $0x1c4] sm:$0xf]
        %v460 = vld [vmem:[#allocation4 + $0x1c8] sm:$0xf]
        %v461 = vld [vmem:[#allocation4 + $0x1cc] sm:$0xf]
        %v462 = vld [vmem:[#allocation4 + $0x1d0] sm:$0xf]
        %v463 = vld [vmem:[#allocation4 + $0x1d4] sm:$0xf]
        %v464 = vld [vmem:[#allocation4 + $0x1d8] sm:$0xf]
        %v465 = vld [vmem:[#allocation4 + $0x1dc] sm:$0xf]
        %v466 = vld [vmem:[#allocation4 + $0x1e0] sm:$0xf]
        %v467 = vld [vmem:[#allocation4 + $0x1e4] sm:$0xf]
        %v468 = vld [vmem:[#allocation4 + $0x1e8] sm:$0xf]
        %v469 = vld [vmem:[#allocation4 + $0x1ec] sm:$0xf]
        %v470 = vld [vmem:[#allocation4 + $0x1f0] sm:$0xf]
        %v471 = vld [vmem:[#allocation4 + $0x1f4] sm:$0xf]
        %v472 = vld [vmem:[#allocation4 + $0x1f8] sm:$0xf]
        %v473 = vld [vmem:[#allocation4 + $0x1fc] sm:$0xf]
        %v474 = vld [vmem:[#allocation4 + $0x200] sm:$0xf]
        %v475 = vld [vmem:[#allocation4 + $0x204] sm:$0xf]
        %v476 = vld [vmem:[#allocation4 + $0x208] sm:$0xf]
        %v477 = vld [vmem:[#allocation4 + $0x20c] sm:$0xf]
        %v478 = vld [vmem:[#allocation4 + $0x210] sm:$0xf]
        %v479 = vld [vmem:[#allocation4 + $0x214] sm:$0xf]
        %v480 = vld [vmem:[#allocation4 + $0x218] sm:$0xf]
        %v481 = vld [vmem:[#allocation4 + $0x21c] sm:$0xf]
        %v482 = vld [vmem:[#allocation4 + $0x220] sm:$0xf]
        %v483 = vld [vmem:[#allocation4 + $0x224] sm:$0xf]
        %v484 = vld [vmem:[#allocation4 + $0x228] sm:$0xf]
        %v485 = vld [vmem:[#allocation4 + $0x22c] sm:$0xf]
        %v486 = vld [vmem:[#allocation4 + $0x230] sm:$0xf]
        %v487 = vld [vmem:[#allocation4 + $0x234] sm:$0xf]
        %v488 = vld [vmem:[#allocation4 + $0x238] sm:$0xf]
        %v489 = vld [vmem:[#allocation4 + $0x23c] sm:$0xf]
        %v490 = vld [vmem:[#allocation4 + $0x240] sm:$0xf]
        %v491 = vld [vmem:[#allocation4 + $0x244] sm:$0xf]
        %v492 = vld [vmem:[#allocation4 + $0x248] sm:$0xf]
        %v493 = vld [vmem:[#allocation4 + $0x24c] sm:$0xf]
        %v494 = vld [vmem:[#allocation4 + $0x250] sm:$0xf]
        %v495 = vld [vmem:[#allocation4 + $0x254] sm:$0xf]
        %v496 = vld [vmem:[#allocation4 + $0x258] sm:$0xf]
        %v497 = vld [vmem:[#allocation4 + $0x25c] sm:$0xf]
        %v498 = vld [vmem:[#allocation4 + $0x260] sm:$0xf]
        %v499 = vld [vmem:[#allocation4 + $0x264] sm:$0xf]
        %v500 = vld [vmem:[#allocation4 + $0x268] sm:$0xf]
        %v501 = vld [vmem:[#allocation4 + $0x26c] sm:$0xf]
        %v502 = vld [vmem:[#allocation4 + $0x270] sm:$0xf]
        %v503 = vld [vmem:[#allocation4 + $0x274] sm:$0xf]
        %v504 = vld [vmem:[#allocation4 + $0x278] sm:$0xf]
        %v505 = vld [vmem:[#allocation4 + $0x27c] sm:$0xf]
        %v506 = vld [vmem:[#allocation4 + $0x280] sm:$0xf]
        %v507 = vld [vmem:[#allocation4 + $0x284] sm:$0xf]
        %v508 = vld [vmem:[#allocation4 + $0x288] sm:$0xf]
        %v509 = vld [vmem:[#allocation4 + $0x28c] sm:$0xf]
        %v510 = vld [vmem:[#allocation4 + $0x290] sm:$0xf]
        %v511 = vld [vmem:[#allocation4 + $0x294] sm:$0xf]
        %v512 = vld [vmem:[#allocation4 + $0x298] sm:$0xf]
        %v513 = vld [vmem:[#allocation4 + $0x29c] sm:$0xf]
        %v514 = vld [vmem:[#allocation4 + $0x2a0] sm:$0xf]
        %v515 = vld [vmem:[#allocation4 + $0x2a4] sm:$0xf]
        %v516 = vld [vmem:[#allocation4 + $0x2a8] sm:$0xf]
        %v517 = vld [vmem:[#allocation4 + $0x2ac] sm:$0xf]
        %v518 = vld [vmem:[#allocation4 + $0x2b0] sm:$0xf]
        %v519 = vld [vmem:[#allocation4 + $0x2b4] sm:$0xf]
        %v520 = vld [vmem:[#allocation4 + $0x2b8] sm:$0xf]
        %v521 = vld [vmem:[#allocation4 + $0x2bc] sm:$0xf]
        %v522 = vld [vmem:[#allocation4 + $0x2c0] sm:$0xf]
        %v523 = vld [vmem:[#allocation4 + $0x2c4] sm:$0xf]
        %v524 = vld [vmem:[#allocation4 + $0x2c8] sm:$0xf]
        %v525 = vld [vmem:[#allocation4 + $0x2cc] sm:$0xf]
        %v526 = vld [vmem:[#allocation4 + $0x2d0] sm:$0xf]
        %v527 = vld [vmem:[#allocation4 + $0x2d4] sm:$0xf]
        %v528 = vld [vmem:[#allocation4 + $0x2d8] sm:$0xf]
        %v529 = vld [vmem:[#allocation4 + $0x2dc] sm:$0xf]
        %v530 = vld [vmem:[#allocation4 + $0x2e0] sm:$0xf]
        %v531 = vld [vmem:[#allocation4 + $0x2e4] sm:$0xf]
        %v532 = vld [vmem:[#allocation4 + $0x2e8] sm:$0xf]
        %v533 = vld [vmem:[#allocation4 + $0x2ec] sm:$0xf]
        %v534 = vld [vmem:[#allocation4 + $0x2f0] sm:$0xf]
        %v535 = vld [vmem:[#allocation4 + $0x2f4] sm:$0xf]
        %v536 = vld [vmem:[#allocation4 + $0x2f8] sm:$0xf]
        %v537 = vld [vmem:[#allocation4 + $0x2fc] sm:$0xf]
        %v538 = vld [vmem:[#allocation4 + $0x300] sm:$0xf]
        %v539 = vld [vmem:[#allocation4 + $0x304] sm:$0xf]
        %v540 = vld [vmem:[#allocation4 + $0x308] sm:$0xf]
        %v541 = vld [vmem:[#allocation4 + $0x30c] sm:$0xf]
        %v542 = vld [vmem:[#allocation4 + $0x310] sm:$0xf]
        %v543 = vld [vmem:[#allocation4 + $0x314] sm:$0xf]
        %v544 = vld [vmem:[#allocation4 + $0x318] sm:$0xf]
        %v545 = vld [vmem:[#allocation4 + $0x31c] sm:$0xf]
        %v546 = vld [vmem:[#allocation4 + $0x320] sm:$0xf]
        %v547 = vld [vmem:[#allocation4 + $0x324] sm:$0xf]
        %v548 = vld [vmem:[#allocation4 + $0x328] sm:$0xf]
        %v549 = vld [vmem:[#allocation4 + $0x32c] sm:$0xf]
        %v550 = vld [vmem:[#allocation4 + $0x330] sm:$0xf]
        %v551 = vld [vmem:[#allocation4 + $0x334] sm:$0xf]
        %v552 = vld [vmem:[#allocation4 + $0x338] sm:$0xf]
        %v553 = vld [vmem:[#allocation4 + $0x33c] sm:$0xf]
        %v554 = vld [vmem:[#allocation4 + $0x340] sm:$0xf]
        %v555 = vld [vmem:[#allocation4 + $0x344] sm:$0xf]
        %v556 = vld [vmem:[#allocation4 + $0x348] sm:$0xf]
        %v557 = vld [vmem:[#allocation4 + $0x34c] sm:$0xf]
        %v558 = vld [vmem:[#allocation4 + $0x350] sm:$0xf]
        %v559 = vld [vmem:[#allocation4 + $0x354] sm:$0xf]
        %v560 = vld [vmem:[#allocation4 + $0x358] sm:$0xf]
        %v561 = vld [vmem:[#allocation4 + $0x35c] sm:$0xf]
        %v562 = vld [vmem:[#allocation4 + $0x360] sm:$0xf]
        %v563 = vld [vmem:[#allocation4 + $0x364] sm:$0xf]
        %v564 = vld [vmem:[#allocation4 + $0x368] sm:$0xf]
        %v565 = vld [vmem:[#allocation4 + $0x36c] sm:$0xf]
        %v566 = vld [vmem:[#allocation4 + $0x370] sm:$0xf]
        %v567 = vld [vmem:[#allocation4 + $0x374] sm:$0xf]
        %v568 = vld [vmem:[#allocation4 + $0x378] sm:$0xf]
        %v569 = vld [vmem:[#allocation4 + $0x37c] sm:$0xf]
        %v570 = vld [vmem:[#allocation4 + $0x380] sm:$0xf]
        %v571 = vld [vmem:[#allocation4 + $0x384] sm:$0xf]
        %v572 = vld [vmem:[#allocation4 + $0x388] sm:$0xf]
        %v573 = vld [vmem:[#allocation4 + $0x38c] sm:$0xf]
        %v574 = vld [vmem:[#allocation4 + $0x390] sm:$0xf]
        %v575 = vld [vmem:[#allocation4 + $0x394] sm:$0xf]
        %v576 = vld [vmem:[#allocation4 + $0x398] sm:$0xf]
        %v577 = vld [vmem:[#allocation4 + $0x39c] sm:$0xf]
        %v578 = vld [vmem:[#allocation4 + $0x3a0] sm:$0xf]
        %v579 = vld [vmem:[#allocation4 + $0x3a4] sm:$0xf]
        %v580 = vld [vmem:[#allocation4 + $0x3a8] sm:$0xf]
        %v581 = vld [vmem:[#allocation4 + $0x3ac] sm:$0xf]
        %v582 = vld [vmem:[#allocation4 + $0x3b0] sm:$0xf]
        %v583 = vld [vmem:[#allocation4 + $0x3b4] sm:$0xf]
        %v584 = vld [vmem:[#allocation4 + $0x3b8] sm:$0xf]
        %v585 = vld [vmem:[#allocation4 + $0x3bc] sm:$0xf]
        %v586 = vld [vmem:[#allocation4 + $0x3c0] sm:$0xf]
        %v587 = vld [vmem:[#allocation4 + $0x3c4] sm:$0xf]
        %v588 = vld [vmem:[#allocation4 + $0x3c8] sm:$0xf]
        %v589 = vld [vmem:[#allocation4 + $0x3cc] sm:$0xf]
        %v590 = vld [vmem:[#allocation4 + $0x3d0] sm:$0xf]
        %v591 = vld [vmem:[#allocation4 + $0x3d4] sm:$0xf]
        %v592 = vld [vmem:[#allocation4 + $0x3d8] sm:$0xf]
        %v593 = vld [vmem:[#allocation4 + $0x3dc] sm:$0xf]
        %v594 = vld [vmem:[#allocation4 + $0x3e0] sm:$0xf]
        %v595 = vld [vmem:[#allocation4 + $0x3e4] sm:$0xf]
        %v596 = vld [vmem:[#allocation4 + $0x3e8] sm:$0xf]
        %v597 = vld [vmem:[#allocation4 + $0x3ec] sm:$0xf]
        %v598 = vld [vmem:[#allocation4 + $0x3f0] sm:$0xf]
        %v599 = vld [vmem:[#allocation4 + $0x3f4] sm:$0xf]
        %v600 = vld [vmem:[#allocation4 + $0x3f8] sm:$0xf]
        %v601 = vld [vmem:[#allocation4 + $0x3fc] sm:$0xf]
        %v602 = vld [vmem:[%s2] sm:$0x1]
        %v604 = vperm.slane %v602, 0
        %v862 = vunpack.c.l.b16 %v346
        %v863 = vunpack.c.l.b16 %v347
        %v864 = vunpack.c.l.b16 %v348
        %v865 = vunpack.c.l.b16 %v349
        %v866 = vunpack.c.l.b16 %v350
        %v867 = vunpack.c.l.b16 %v351
        %v868 = vunpack.c.l.b16 %v352
        %v869 = vunpack.c.l.b16 %v353
        %v870 = vunpack.c.l.b16 %v354
        %v871 = vunpack.c.l.b16 %v355
        %v872 = vunpack.c.l.b16 %v356
        %v873 = vunpack.c.l.b16 %v357
        %v874 = vunpack.c.l.b16 %v358
        %v875 = vunpack.c.l.b16 %v359
        %v876 = vunpack.c.l.b16 %v360
        %v877 = vunpack.c.l.b16 %v361
        %v878 = vunpack.c.l.b16 %v362
        %v879 = vunpack.c.l.b16 %v363
        %v880 = vunpack.c.l.b16 %v364
        %v881 = vunpack.c.l.b16 %v365
        %v882 = vunpack.c.l.b16 %v366
        %v883 = vunpack.c.l.b16 %v367
        %v884 = vunpack.c.l.b16 %v368
        %v885 = vunpack.c.l.b16 %v369
        %v886 = vunpack.c.l.b16 %v370
        %v887 = vunpack.c.l.b16 %v371
        %v888 = vunpack.c.l.b16 %v372
        %v889 = vunpack.c.l.b16 %v373
        %v890 = vunpack.c.l.b16 %v374
        %v891 = vunpack.c.l.b16 %v375
        %v892 = vunpack.c.l.b16 %v376
        %v893 = vunpack.c.l.b16 %v377
        %v894 = vunpack.c.l.b16 %v378
        %v895 = vunpack.c.l.b16 %v379
        %v896 = vunpack.c.l.b16 %v380
        %v897 = vunpack.c.l.b16 %v381
        %v898 = vunpack.c.l.b16 %v382
        %v899 = vunpack.c.l.b16 %v383
        %v900 = vunpack.c.l.b16 %v384
        %v901 = vunpack.c.l.b16 %v385
        %v902 = vunpack.c.l.b16 %v386
        %v903 = vunpack.c.l.b16 %v387
        %v904 = vunpack.c.l.b16 %v388
        %v905 = vunpack.c.l.b16 %v389
        %v906 = vunpack.c.l.b16 %v390
        %v907 = vunpack.c.l.b16 %v391
        %v908 = vunpack.c.l.b16 %v392
        %v909 = vunpack.c.l.b16 %v393
        %v910 = vunpack.c.l.b16 %v394
        %v911 = vunpack.c.l.b16 %v395
        %v912 = vunpack.c.l.b16 %v396
        %v913 = vunpack.c.l.b16 %v397
        %v914 = vunpack.c.l.b16 %v398
        %v915 = vunpack.c.l.b16 %v399
        %v916 = vunpack.c.l.b16 %v400
        %v917 = vunpack.c.l.b16 %v401
        %v918 = vunpack.c.l.b16 %v402
        %v919 = vunpack.c.l.b16 %v403
        %v920 = vunpack.c.l.b16 %v404
        %v921 = vunpack.c.l.b16 %v405
        %v922 = vunpack.c.l.b16 %v406
        %v923 = vunpack.c.l.b16 %v407
        %v924 = vunpack.c.l.b16 %v408
        %v925 = vunpack.c.l.b16 %v409
        %v926 = vunpack.c.l.b16 %v410
        %v927 = vunpack.c.l.b16 %v411
        %v928 = vunpack.c.l.b16 %v412
        %v929 = vunpack.c.l.b16 %v413
        %v930 = vunpack.c.l.b16 %v414
        %v931 = vunpack.c.l.b16 %v415
        %v932 = vunpack.c.l.b16 %v416
        %v933 = vunpack.c.l.b16 %v417
        %v934 = vunpack.c.l.b16 %v418
        %v935 = vunpack.c.l.b16 %v419
        %v936 = vunpack.c.l.b16 %v420
        %v937 = vunpack.c.l.b16 %v421
        %v938 = vunpack.c.l.b16 %v422
        %v939 = vunpack.c.l.b16 %v423
        %v940 = vunpack.c.l.b16 %v424
        %v941 = vunpack.c.l.b16 %v425
        %v942 = vunpack.c.l.b16 %v426
        %v943 = vunpack.c.l.b16 %v427
        %v944 = vunpack.c.l.b16 %v428
        %v945 = vunpack.c.l.b16 %v429
        %v946 = vunpack.c.l.b16 %v430
        %v947 = vunpack.c.l.b16 %v431
        %v948 = vunpack.c.l.b16 %v432
        %v949 = vunpack.c.l.b16 %v433
        %v950 = vunpack.c.l.b16 %v434
        %v951 = vunpack.c.l.b16 %v435
        %v952 = vunpack.c.l.b16 %v436
        %v953 = vunpack.c.l.b16 %v437
        %v954 = vunpack.c.l.b16 %v438
        %v955 = vunpack.c.l.b16 %v439
        %v956 = vunpack.c.l.b16 %v440
        %v957 = vunpack.c.l.b16 %v441
        %v958 = vunpack.c.l.b16 %v442
        %v959 = vunpack.c.l.b16 %v443
        %v960 = vunpack.c.l.b16 %v444
        %v961 = vunpack.c.l.b16 %v445
        %v962 = vunpack.c.l.b16 %v446
        %v963 = vunpack.c.l.b16 %v447
        %v964 = vunpack.c.l.b16 %v448
        %v965 = vunpack.c.l.b16 %v449
        %v966 = vunpack.c.l.b16 %v450
        %v967 = vunpack.c.l.b16 %v451
        %v968 = vunpack.c.l.b16 %v452
        %v969 = vunpack.c.l.b16 %v453
        %v970 = vunpack.c.l.b16 %v454
        %v971 = vunpack.c.l.b16 %v455
        %v972 = vunpack.c.l.b16 %v456
        %v973 = vunpack.c.l.b16 %v457
        %v974 = vunpack.c.l.b16 %v458
        %v975 = vunpack.c.l.b16 %v459
        %v976 = vunpack.c.l.b16 %v460
        %v977 = vunpack.c.l.b16 %v461
        %v978 = vunpack.c.l.b16 %v462
        %v979 = vunpack.c.l.b16 %v463
        %v980 = vunpack.c.l.b16 %v464
        %v981 = vunpack.c.l.b16 %v465
        %v982 = vunpack.c.l.b16 %v466
        %v983 = vunpack.c.l.b16 %v467
        %v984 = vunpack.c.l.b16 %v468
        %v985 = vunpack.c.l.b16 %v469
        %v986 = vunpack.c.l.b16 %v470
        %v987 = vunpack.c.l.b16 %v471
        %v988 = vunpack.c.l.b16 %v472
        %v989 = vunpack.c.l.b16 %v473
        %v990 = vunpack.c.l.b16 %v474
        %v991 = vunpack.c.l.b16 %v475
        %v992 = vunpack.c.l.b16 %v476
        %v993 = vunpack.c.l.b16 %v477
        %v994 = vunpack.c.l.b16 %v478
        %v995 = vunpack.c.l.b16 %v479
        %v996 = vunpack.c.l.b16 %v480
        %v997 = vunpack.c.l.b16 %v481
        %v998 = vunpack.c.l.b16 %v482
        %v999 = vunpack.c.l.b16 %v483
        %v1000 = vunpack.c.l.b16 %v484
        %v1001 = vunpack.c.l.b16 %v485
        %v1002 = vunpack.c.l.b16 %v486
        %v1003 = vunpack.c.l.b16 %v487
        %v1004 = vunpack.c.l.b16 %v488
        %v1005 = vunpack.c.l.b16 %v489
        %v1006 = vunpack.c.l.b16 %v490
        %v1007 = vunpack.c.l.b16 %v491
        %v1008 = vunpack.c.l.b16 %v492
        %v1009 = vunpack.c.l.b16 %v493
        %v1010 = vunpack.c.l.b16 %v494
        %v1011 = vunpack.c.l.b16 %v495
        %v1012 = vunpack.c.l.b16 %v496
        %v1013 = vunpack.c.l.b16 %v497
        %v1014 = vunpack.c.l.b16 %v498
        %v1015 = vunpack.c.l.b16 %v499
        %v1016 = vunpack.c.l.b16 %v500
        %v1017 = vunpack.c.l.b16 %v501
        %v1018 = vunpack.c.l.b16 %v502
        %v1019 = vunpack.c.l.b16 %v503
        %v1020 = vunpack.c.l.b16 %v504
        %v1021 = vunpack.c.l.b16 %v505
        %v1022 = vunpack.c.l.b16 %v506
        %v1023 = vunpack.c.l.b16 %v507
        %v1024 = vunpack.c.l.b16 %v508
        %v1025 = vunpack.c.l.b16 %v509
        %v1026 = vunpack.c.l.b16 %v510
        %v1027 = vunpack.c.l.b16 %v511
        %v1028 = vunpack.c.l.b16 %v512
        %v1029 = vunpack.c.l.b16 %v513
        %v1030 = vunpack.c.l.b16 %v514
        %v1031 = vunpack.c.l.b16 %v515
        %v1032 = vunpack.c.l.b16 %v516
        %v1033 = vunpack.c.l.b16 %v517
        %v1034 = vunpack.c.l.b16 %v518
        %v1035 = vunpack.c.l.b16 %v519
        %v1036 = vunpack.c.l.b16 %v520
        %v1037 = vunpack.c.l.b16 %v521
        %v1038 = vunpack.c.l.b16 %v522
        %v1039 = vunpack.c.l.b16 %v523
        %v1040 = vunpack.c.l.b16 %v524
        %v1041 = vunpack.c.l.b16 %v525
        %v1042 = vunpack.c.l.b16 %v526
        %v1043 = vunpack.c.l.b16 %v527
        %v1044 = vunpack.c.l.b16 %v528
        %v1045 = vunpack.c.l.b16 %v529
        %v1046 = vunpack.c.l.b16 %v530
        %v1047 = vunpack.c.l.b16 %v531
        %v1048 = vunpack.c.l.b16 %v532
        %v1049 = vunpack.c.l.b16 %v533
        %v1050 = vunpack.c.l.b16 %v534
        %v1051 = vunpack.c.l.b16 %v535
        %v1052 = vunpack.c.l.b16 %v536
        %v1053 = vunpack.c.l.b16 %v537
        %v1054 = vunpack.c.l.b16 %v538
        %v1055 = vunpack.c.l.b16 %v539
        %v1056 = vunpack.c.l.b16 %v540
        %v1057 = vunpack.c.l.b16 %v541
        %v1058 = vunpack.c.l.b16 %v542
        %v1059 = vunpack.c.l.b16 %v543
        %v1060 = vunpack.c.l.b16 %v544
        %v1061 = vunpack.c.l.b16 %v545
        %v1062 = vunpack.c.l.b16 %v546
        %v1063 = vunpack.c.l.b16 %v547
        %v1064 = vunpack.c.l.b16 %v548
        %v1065 = vunpack.c.l.b16 %v549
        %v1066 = vunpack.c.l.b16 %v550
        %v1067 = vunpack.c.l.b16 %v551
        %v1068 = vunpack.c.l.b16 %v552
        %v1069 = vunpack.c.l.b16 %v553
        %v1070 = vunpack.c.l.b16 %v554
        %v1071 = vunpack.c.l.b16 %v555
        %v1072 = vunpack.c.l.b16 %v556
        %v1073 = vunpack.c.l.b16 %v557
        %v1074 = vunpack.c.l.b16 %v558
        %v1075 = vunpack.c.l.b16 %v559
        %v1076 = vunpack.c.l.b16 %v560
        %v1077 = vunpack.c.l.b16 %v561
        %v1078 = vunpack.c.l.b16 %v562
        %v1079 = vunpack.c.l.b16 %v563
        %v1080 = vunpack.c.l.b16 %v564
        %v1081 = vunpack.c.l.b16 %v565
        %v1082 = vunpack.c.l.b16 %v566
        %v1083 = vunpack.c.l.b16 %v567
        %v1084 = vunpack.c.l.b16 %v568
        %v1085 = vunpack.c.l.b16 %v569
        %v1086 = vunpack.c.l.b16 %v570
        %v1087 = vunpack.c.l.b16 %v571
        %v1088 = vunpack.c.l.b16 %v572
        %v1089 = vunpack.c.l.b16 %v573
        %v1090 = vunpack.c.l.b16 %v574
        %v1091 = vunpack.c.l.b16 %v575
        %v1092 = vunpack.c.l.b16 %v576
        %v1093 = vunpack.c.l.b16 %v577
        %v1094 = vunpack.c.l.b16 %v578
        %v1095 = vunpack.c.l.b16 %v579
        %v1096 = vunpack.c.l.b16 %v580
        %v1097 = vunpack.c.l.b16 %v581
        %v1098 = vunpack.c.l.b16 %v582
        %v1099 = vunpack.c.l.b16 %v583
        %v1100 = vunpack.c.l.b16 %v584
        %v1101 = vunpack.c.l.b16 %v585
        %v1102 = vunpack.c.l.b16 %v586
        %v1103 = vunpack.c.l.b16 %v587
        %v1104 = vunpack.c.l.b16 %v588
        %v1105 = vunpack.c.l.b16 %v589
        %v1106 = vunpack.c.l.b16 %v590
        %v1107 = vunpack.c.l.b16 %v591
        %v1108 = vunpack.c.l.b16 %v592
        %v1109 = vunpack.c.l.b16 %v593
        %v1110 = vunpack.c.l.b16 %v594
        %v1111 = vunpack.c.l.b16 %v595
        %v1112 = vunpack.c.l.b16 %v596
        %v1113 = vunpack.c.l.b16 %v597
        %v1114 = vunpack.c.l.b16 %v598
        %v1115 = vunpack.c.l.b16 %v599
        %v1116 = vunpack.c.l.b16 %v600
        %v1117 = vunpack.c.l.b16 %v601
        %v1118 = vpack.c.b16 %v863, %v862
        %v1119 = vpack.c.b16 %v865, %v864
        %v1120 = vpack.c.b16 %v867, %v866
        %v1121 = vpack.c.b16 %v869, %v868
        %v1122 = vpack.c.b16 %v871, %v870
        %v1123 = vpack.c.b16 %v873, %v872
        %v1124 = vpack.c.b16 %v875, %v874
        %v1125 = vpack.c.b16 %v877, %v876
        %v1126 = vpack.c.b16 %v879, %v878
        %v1127 = vpack.c.b16 %v881, %v880
        %v1128 = vpack.c.b16 %v883, %v882
        %v1129 = vpack.c.b16 %v885, %v884
        %v1130 = vpack.c.b16 %v887, %v886
        %v1131 = vpack.c.b16 %v889, %v888
        %v1132 = vpack.c.b16 %v891, %v890
        %v1133 = vpack.c.b16 %v893, %v892
        %v1134 = vpack.c.b16 %v895, %v894
        %v1135 = vpack.c.b16 %v897, %v896
        %v1136 = vpack.c.b16 %v899, %v898
        %v1137 = vpack.c.b16 %v901, %v900
        %v1138 = vpack.c.b16 %v903, %v902
        %v1139 = vpack.c.b16 %v905, %v904
        %v1140 = vpack.c.b16 %v907, %v906
        %v1141 = vpack.c.b16 %v909, %v908
        %v1142 = vpack.c.b16 %v911, %v910
        %v1143 = vpack.c.b16 %v913, %v912
        %v1144 = vpack.c.b16 %v915, %v914
        %v1145 = vpack.c.b16 %v917, %v916
        %v1146 = vpack.c.b16 %v919, %v918
        %v1147 = vpack.c.b16 %v921, %v920
        %v1148 = vpack.c.b16 %v923, %v922
        %v1149 = vpack.c.b16 %v925, %v924
        %v1150 = vpack.c.b16 %v927, %v926
        %v1151 = vpack.c.b16 %v929, %v928
        %v1152 = vpack.c.b16 %v931, %v930
        %v1153 = vpack.c.b16 %v933, %v932
        %v1154 = vpack.c.b16 %v935, %v934
        %v1155 = vpack.c.b16 %v937, %v936
        %v1156 = vpack.c.b16 %v939, %v938
        %v1157 = vpack.c.b16 %v941, %v940
        %v1158 = vpack.c.b16 %v943, %v942
        %v1159 = vpack.c.b16 %v945, %v944
        %v1160 = vpack.c.b16 %v947, %v946
        %v1161 = vpack.c.b16 %v949, %v948
        %v1162 = vpack.c.b16 %v951, %v950
        %v1163 = vpack.c.b16 %v953, %v952
        %v1164 = vpack.c.b16 %v955, %v954
        %v1165 = vpack.c.b16 %v957, %v956
        %v1166 = vpack.c.b16 %v959, %v958
        %v1167 = vpack.c.b16 %v961, %v960
        %v1168 = vpack.c.b16 %v963, %v962
        %v1169 = vpack.c.b16 %v965, %v964
        %v1170 = vpack.c.b16 %v967, %v966
        %v1171 = vpack.c.b16 %v969, %v968
        %v1172 = vpack.c.b16 %v971, %v970
        %v1173 = vpack.c.b16 %v973, %v972
        %v1174 = vpack.c.b16 %v975, %v974
        %v1175 = vpack.c.b16 %v977, %v976
        %v1176 = vpack.c.b16 %v979, %v978
        %v1177 = vpack.c.b16 %v981, %v980
        %v1178 = vpack.c.b16 %v983, %v982
        %v1179 = vpack.c.b16 %v985, %v984
        %v1180 = vpack.c.b16 %v987, %v986
        %v1181 = vpack.c.b16 %v989, %v988
        %v1182 = vpack.c.b16 %v991, %v990
        %v1183 = vpack.c.b16 %v993, %v992
        %v1184 = vpack.c.b16 %v995, %v994
        %v1185 = vpack.c.b16 %v997, %v996
        %v1186 = vpack.c.b16 %v999, %v998
        %v1187 = vpack.c.b16 %v1001, %v1000
        %v1188 = vpack.c.b16 %v1003, %v1002
        %v1189 = vpack.c.b16 %v1005, %v1004
        %v1190 = vpack.c.b16 %v1007, %v1006
        %v1191 = vpack.c.b16 %v1009, %v1008
        %v1192 = vpack.c.b16 %v1011, %v1010
        %v1193 = vpack.c.b16 %v1013, %v1012
        %v1194 = vpack.c.b16 %v1015, %v1014
        %v1195 = vpack.c.b16 %v1017, %v1016
        %v1196 = vpack.c.b16 %v1019, %v1018
        %v1197 = vpack.c.b16 %v1021, %v1020
        %v1198 = vpack.c.b16 %v1023, %v1022
        %v1199 = vpack.c.b16 %v1025, %v1024
        %v1200 = vpack.c.b16 %v1027, %v1026
        %v1201 = vpack.c.b16 %v1029, %v1028
        %v1202 = vpack.c.b16 %v1031, %v1030
        %v1203 = vpack.c.b16 %v1033, %v1032
        %v1204 = vpack.c.b16 %v1035, %v1034
        %v1205 = vpack.c.b16 %v1037, %v1036
        %v1206 = vpack.c.b16 %v1039, %v1038
        %v1207 = vpack.c.b16 %v1041, %v1040
        %v1208 = vpack.c.b16 %v1043, %v1042
        %v1209 = vpack.c.b16 %v1045, %v1044
        %v1210 = vpack.c.b16 %v1047, %v1046
        %v1211 = vpack.c.b16 %v1049, %v1048
        %v1212 = vpack.c.b16 %v1051, %v1050
        %v1213 = vpack.c.b16 %v1053, %v1052
        %v1214 = vpack.c.b16 %v1055, %v1054
        %v1215 = vpack.c.b16 %v1057, %v1056
        %v1216 = vpack.c.b16 %v1059, %v1058
        %v1217 = vpack.c.b16 %v1061, %v1060
        %v1218 = vpack.c.b16 %v1063, %v1062
        %v1219 = vpack.c.b16 %v1065, %v1064
        %v1220 = vpack.c.b16 %v1067, %v1066
        %v1221 = vpack.c.b16 %v1069, %v1068
        %v1222 = vpack.c.b16 %v1071, %v1070
        %v1223 = vpack.c.b16 %v1073, %v1072
        %v1224 = vpack.c.b16 %v1075, %v1074
        %v1225 = vpack.c.b16 %v1077, %v1076
        %v1226 = vpack.c.b16 %v1079, %v1078
        %v1227 = vpack.c.b16 %v1081, %v1080
        %v1228 = vpack.c.b16 %v1083, %v1082
        %v1229 = vpack.c.b16 %v1085, %v1084
        %v1230 = vpack.c.b16 %v1087, %v1086
        %v1231 = vpack.c.b16 %v1089, %v1088
        %v1232 = vpack.c.b16 %v1091, %v1090
        %v1233 = vpack.c.b16 %v1093, %v1092
        %v1234 = vpack.c.b16 %v1095, %v1094
        %v1235 = vpack.c.b16 %v1097, %v1096
        %v1236 = vpack.c.b16 %v1099, %v1098
        %v1237 = vpack.c.b16 %v1101, %v1100
        %v1238 = vpack.c.b16 %v1103, %v1102
        %v1239 = vpack.c.b16 %v1105, %v1104
        %v1240 = vpack.c.b16 %v1107, %v1106
        %v1241 = vpack.c.b16 %v1109, %v1108
        %v1242 = vpack.c.b16 %v1111, %v1110
        %v1243 = vpack.c.b16 %v1113, %v1112
        %v1244 = vpack.c.b16 %v1115, %v1114
        %v1245 = vpack.c.b16 %v1117, %v1116
        %1374 = vmatpush.bf16.msra.mxu0 %v1125
        %1375 = vmatpush.bf16.msra.mxu0 %v1124
        %1376 = vmatpush.bf16.msra.mxu0 %v1123
        %1377 = vmatpush.bf16.msra.mxu0 %v1122
        %1378 = vmatpush.bf16.msra.mxu0 %v1121
        %1379 = vmatpush.bf16.msra.mxu0 %v1120
        %1380 = vmatpush.bf16.msra.mxu0 %v1119
        %1381 = vmatpush.bf16.msra.mxu0 %v1118
        %1382 = vmatmul.bf16.gmra.mxu0 %v330
        %v1383 = vpop.f32.mrf.mxu0
        %v1384 = vadd.f32 %v604, %v1383
        %v1385 = vpop.f32.mrf.mxu0
        %1386 = vdwg.mxu0
        %1387 = vmatpush.bf16.msra.mxu0 %v1133
        %1388 = vmatpush.bf16.msra.mxu0 %v1132
        %1389 = vmatpush.bf16.msra.mxu0 %v1131
        %1390 = vmatpush.bf16.msra.mxu0 %v1130
        %1391 = vmatpush.bf16.msra.mxu0 %v1129
        %1392 = vmatpush.bf16.msra.mxu0 %v1128
        %1393 = vmatpush.bf16.msra.mxu0 %v1127
        %1394 = vmatpush.bf16.msra.mxu0 %v1126
        %1395 = vmatmul.bf16.gmra.mxu0 %v331
        %v1396 = vpop.f32.mrf.mxu0
        %v1397 = vadd.f32 %v1384, %v1396
        %v1398 = vpop.f32.mrf.mxu0
        %1399 = vdwg.mxu0
        %1400 = vmatpush.bf16.msra.mxu0 %v1141
        %1401 = vmatpush.bf16.msra.mxu0 %v1140
        %1402 = vmatpush.bf16.msra.mxu0 %v1139
        %1403 = vmatpush.bf16.msra.mxu0 %v1138
        %1404 = vmatpush.bf16.msra.mxu0 %v1137
        %1405 = vmatpush.bf16.msra.mxu0 %v1136
        %1406 = vmatpush.bf16.msra.mxu0 %v1135
        %1407 = vmatpush.bf16.msra.mxu0 %v1134
        %1408 = vmatmul.bf16.gmra.mxu0 %v332
        %v1409 = vpop.f32.mrf.mxu0
        %v1410 = vadd.f32 %v1397, %v1409
        %v1411 = vpop.f32.mrf.mxu0
        %1412 = vdwg.mxu0
        %1413 = vmatpush.bf16.msra.mxu0 %v1149
        %1414 = vmatpush.bf16.msra.mxu0 %v1148
        %1415 = vmatpush.bf16.msra.mxu0 %v1147
        %1416 = vmatpush.bf16.msra.mxu0 %v1146
        %1417 = vmatpush.bf16.msra.mxu0 %v1145
        %1418 = vmatpush.bf16.msra.mxu0 %v1144
        %1419 = vmatpush.bf16.msra.mxu0 %v1143
        %1420 = vmatpush.bf16.msra.mxu0 %v1142
        %1421 = vmatmul.bf16.gmra.mxu0 %v333
        %v1422 = vpop.f32.mrf.mxu0
        %v1423 = vadd.f32 %v1410, %v1422
        %v1424 = vpop.f32.mrf.mxu0
        %1425 = vdwg.mxu0
        %1426 = vmatpush.bf16.msra.mxu0 %v1157
        %1427 = vmatpush.bf16.msra.mxu0 %v1156
        %1428 = vmatpush.bf16.msra.mxu0 %v1155
        %1429 = vmatpush.bf16.msra.mxu0 %v1154
        %1430 = vmatpush.bf16.msra.mxu0 %v1153
        %1431 = vmatpush.bf16.msra.mxu0 %v1152
        %1432 = vmatpush.bf16.msra.mxu0 %v1151
        %1433 = vmatpush.bf16.msra.mxu0 %v1150
        %1434 = vmatmul.bf16.gmra.mxu0 %v334
        %v1435 = vpop.f32.mrf.mxu0
        %v1436 = vadd.f32 %v1423, %v1435
        %v1437 = vpop.f32.mrf.mxu0
        %1438 = vdwg.mxu0
        %1439 = vmatpush.bf16.msra.mxu0 %v1165
        %1440 = vmatpush.bf16.msra.mxu0 %v1164
        %1441 = vmatpush.bf16.msra.mxu0 %v1163
        %1442 = vmatpush.bf16.msra.mxu0 %v1162
        %1443 = vmatpush.bf16.msra.mxu0 %v1161
        %1444 = vmatpush.bf16.msra.mxu0 %v1160
        %1445 = vmatpush.bf16.msra.mxu0 %v1159
        %1446 = vmatpush.bf16.msra.mxu0 %v1158
        %1447 = vmatmul.bf16.gmra.mxu0 %v335
        %v1448 = vpop.f32.mrf.mxu0
        %v1449 = vadd.f32 %v1436, %v1448
        %v1450 = vpop.f32.mrf.mxu0
        %1451 = vdwg.mxu0
        %1452 = vmatpush.bf16.msra.mxu0 %v1173
        %1453 = vmatpush.bf16.msra.mxu0 %v1172
        %1454 = vmatpush.bf16.msra.mxu0 %v1171
        %1455 = vmatpush.bf16.msra.mxu0 %v1170
        %1456 = vmatpush.bf16.msra.mxu0 %v1169
        %1457 = vmatpush.bf16.msra.mxu0 %v1168
        %1458 = vmatpush.bf16.msra.mxu0 %v1167
        %1459 = vmatpush.bf16.msra.mxu0 %v1166
        %1460 = vmatmul.bf16.gmra.mxu0 %v336
        %v1461 = vpop.f32.mrf.mxu0
        %v1462 = vadd.f32 %v1449, %v1461
        %v1463 = vpop.f32.mrf.mxu0
        %1464 = vdwg.mxu0
        %1465 = vmatpush.bf16.msra.mxu0 %v1181
        %1466 = vmatpush.bf16.msra.mxu0 %v1180
        %1467 = vmatpush.bf16.msra.mxu0 %v1179
        %1468 = vmatpush.bf16.msra.mxu0 %v1178
        %1469 = vmatpush.bf16.msra.mxu0 %v1177
        %1470 = vmatpush.bf16.msra.mxu0 %v1176
        %1471 = vmatpush.bf16.msra.mxu0 %v1175
        %1472 = vmatpush.bf16.msra.mxu0 %v1174
        %1473 = vmatmul.bf16.gmra.mxu0 %v337
        %v1474 = vpop.f32.mrf.mxu0
        %v1475 = vadd.f32 %v1462, %v1474
        %v1476 = vpop.f32.mrf.mxu0
        %1477 = vdwg.mxu0
        %1478 = vmatpush.bf16.msra.mxu0 %v1189
        %1479 = vmatpush.bf16.msra.mxu0 %v1188
        %1480 = vmatpush.bf16.msra.mxu0 %v1187
        %1481 = vmatpush.bf16.msra.mxu0 %v1186
        %1482 = vmatpush.bf16.msra.mxu0 %v1185
        %1483 = vmatpush.bf16.msra.mxu0 %v1184
        %1484 = vmatpush.bf16.msra.mxu0 %v1183
        %1485 = vmatpush.bf16.msra.mxu0 %v1182
        %1486 = vmatmul.bf16.gmra.mxu0 %v338
        %v1487 = vpop.f32.mrf.mxu0
        %v1488 = vadd.f32 %v1475, %v1487
        %v1489 = vpop.f32.mrf.mxu0
        %1490 = vdwg.mxu0
        %1491 = vmatpush.bf16.msra.mxu0 %v1197
        %1492 = vmatpush.bf16.msra.mxu0 %v1196
        %1493 = vmatpush.bf16.msra.mxu0 %v1195
        %1494 = vmatpush.bf16.msra.mxu0 %v1194
        %1495 = vmatpush.bf16.msra.mxu0 %v1193
        %1496 = vmatpush.bf16.msra.mxu0 %v1192
        %1497 = vmatpush.bf16.msra.mxu0 %v1191
        %1498 = vmatpush.bf16.msra.mxu0 %v1190
        %1499 = vmatmul.bf16.gmra.mxu0 %v339
        %v1500 = vpop.f32.mrf.mxu0
        %v1501 = vadd.f32 %v1488, %v1500
        %v1502 = vpop.f32.mrf.mxu0
        %1503 = vdwg.mxu0
        %1504 = vmatpush.bf16.msra.mxu0 %v1205
        %1505 = vmatpush.bf16.msra.mxu0 %v1204
        %1506 = vmatpush.bf16.msra.mxu0 %v1203
        %1507 = vmatpush.bf16.msra.mxu0 %v1202
        %1508 = vmatpush.bf16.msra.mxu0 %v1201
        %1509 = vmatpush.bf16.msra.mxu0 %v1200
        %1510 = vmatpush.bf16.msra.mxu0 %v1199
        %1511 = vmatpush.bf16.msra.mxu0 %v1198
        %1512 = vmatmul.bf16.gmra.mxu0 %v340
        %v1513 = vpop.f32.mrf.mxu0
        %v1514 = vadd.f32 %v1501, %v1513
        %v1515 = vpop.f32.mrf.mxu0
        %1516 = vdwg.mxu0
        %1517 = vmatpush.bf16.msra.mxu0 %v1213
        %1518 = vmatpush.bf16.msra.mxu0 %v1212
        %1519 = vmatpush.bf16.msra.mxu0 %v1211
        %1520 = vmatpush.bf16.msra.mxu0 %v1210
        %1521 = vmatpush.bf16.msra.mxu0 %v1209
        %1522 = vmatpush.bf16.msra.mxu0 %v1208
        %1523 = vmatpush.bf16.msra.mxu0 %v1207
        %1524 = vmatpush.bf16.msra.mxu0 %v1206
        %1525 = vmatmul.bf16.gmra.mxu0 %v341
        %v1526 = vpop.f32.mrf.mxu0
        %v1527 = vadd.f32 %v1514, %v1526
        %v1528 = vpop.f32.mrf.mxu0
        %1529 = vdwg.mxu0
        %1530 = vmatpush.bf16.msra.mxu0 %v1221
        %1531 = vmatpush.bf16.msra.mxu0 %v1220
        %1532 = vmatpush.bf16.msra.mxu0 %v1219
        %1533 = vmatpush.bf16.msra.mxu0 %v1218
        %1534 = vmatpush.bf16.msra.mxu0 %v1217
        %1535 = vmatpush.bf16.msra.mxu0 %v1216
        %1536 = vmatpush.bf16.msra.mxu0 %v1215
        %1537 = vmatpush.bf16.msra.mxu0 %v1214
        %1538 = vmatmul.bf16.gmra.mxu0 %v342
        %v1539 = vpop.f32.mrf.mxu0
        %v1540 = vadd.f32 %v1527, %v1539
        %v1541 = vpop.f32.mrf.mxu0
        %1542 = vdwg.mxu0
        %1543 = vmatpush.bf16.msra.mxu0 %v1229
        %1544 = vmatpush.bf16.msra.mxu0 %v1228
        %1545 = vmatpush.bf16.msra.mxu0 %v1227
        %1546 = vmatpush.bf16.msra.mxu0 %v1226
        %1547 = vmatpush.bf16.msra.mxu0 %v1225
        %1548 = vmatpush.bf16.msra.mxu0 %v1224
        %1549 = vmatpush.bf16.msra.mxu0 %v1223
        %1550 = vmatpush.bf16.msra.mxu0 %v1222
        %1551 = vmatmul.bf16.gmra.mxu0 %v343
        %v1552 = vpop.f32.mrf.mxu0
        %v1553 = vadd.f32 %v1540, %v1552
        %v1554 = vpop.f32.mrf.mxu0
        %1555 = vdwg.mxu0
        %1556 = vmatpush.bf16.msra.mxu0 %v1237
        %1557 = vmatpush.bf16.msra.mxu0 %v1236
        %1558 = vmatpush.bf16.msra.mxu0 %v1235
        %1559 = vmatpush.bf16.msra.mxu0 %v1234
        %1560 = vmatpush.bf16.msra.mxu0 %v1233
        %1561 = vmatpush.bf16.msra.mxu0 %v1232
        %1562 = vmatpush.bf16.msra.mxu0 %v1231
        %1563 = vmatpush.bf16.msra.mxu0 %v1230
        %1564 = vmatmul.bf16.gmra.mxu0 %v344
        %v1565 = vpop.f32.mrf.mxu0
        %v1566 = vadd.f32 %v1553, %v1565
        %v1567 = vpop.f32.mrf.mxu0
        %1568 = vdwg.mxu0
        %1569 = vmatpush.bf16.msra.mxu0 %v1245
        %1570 = vmatpush.bf16.msra.mxu0 %v1244
        %1571 = vmatpush.bf16.msra.mxu0 %v1243
        %1572 = vmatpush.bf16.msra.mxu0 %v1242
        %1573 = vmatpush.bf16.msra.mxu0 %v1241
        %1574 = vmatpush.bf16.msra.mxu0 %v1240
        %1575 = vmatpush.bf16.msra.mxu0 %v1239
        %1576 = vmatpush.bf16.msra.mxu0 %v1238
        %1577 = vmatmul.bf16.gmra.mxu0 %v345
        %v1578 = vpop.f32.mrf.mxu0
        %v1579 = vadd.f32 %v1566, %v1578
        %v1580 = vpop.f32.mrf.mxu0
        %1581 = vdwg.mxu0
        %v1582 = vmax.f32 %v1579, 0.0
        %v1583 = vpack.c.bf16 %v1582, %v1582
        %v1584 = vld [vmem:[%s3] sm:$0xf]
        %v1585 = vld [vmem:[%s3 + $0x4] sm:$0xf]
        %v1586 = vld [vmem:[%s3 + $0x8] sm:$0xf]
        %v1587 = vld [vmem:[%s3 + $0xc] sm:$0xf]
        %v1588 = vld [vmem:[%s3 + $0x10] sm:$0xf]
        %v1589 = vld [vmem:[%s3 + $0x14] sm:$0xf]
        %v1590 = vld [vmem:[%s3 + $0x18] sm:$0xf]
        %v1591 = vld [vmem:[%s3 + $0x1c] sm:$0xf]
        %v1592 = vld [vmem:[%s3 + $0x20] sm:$0xf]
        %v1593 = vld [vmem:[%s3 + $0x24] sm:$0xf]
        %v1594 = vld [vmem:[%s3 + $0x28] sm:$0xf]
        %v1595 = vld [vmem:[%s3 + $0x2c] sm:$0xf]
        %v1596 = vld [vmem:[%s3 + $0x30] sm:$0xf]
        %v1597 = vld [vmem:[%s3 + $0x34] sm:$0xf]
        %v1598 = vld [vmem:[%s3 + $0x38] sm:$0xf]
        %v1599 = vld [vmem:[%s3 + $0x3c] sm:$0xf]
        %v1600 = vld [vmem:[%s4] sm:$0x1]
        %v1602 = vperm.slane %v1600, 0
        %v1620 = vunpack.c.l.b16 %v1584
        %v1621 = vunpack.c.l.b16 %v1585
        %v1622 = vunpack.c.l.b16 %v1586
        %v1623 = vunpack.c.l.b16 %v1587
        %v1624 = vunpack.c.l.b16 %v1588
        %v1625 = vunpack.c.l.b16 %v1589
        %v1626 = vunpack.c.l.b16 %v1590
        %v1627 = vunpack.c.l.b16 %v1591
        %v1628 = vunpack.c.l.b16 %v1592
        %v1629 = vunpack.c.l.b16 %v1593
        %v1630 = vunpack.c.l.b16 %v1594
        %v1631 = vunpack.c.l.b16 %v1595
        %v1632 = vunpack.c.l.b16 %v1596
        %v1633 = vunpack.c.l.b16 %v1597
        %v1634 = vunpack.c.l.b16 %v1598
        %v1635 = vunpack.c.l.b16 %v1599
        %v1636 = vpack.c.b16 %v1621, %v1620
        %v1637 = vpack.c.b16 %v1623, %v1622
        %v1638 = vpack.c.b16 %v1625, %v1624
        %v1639 = vpack.c.b16 %v1627, %v1626
        %v1640 = vpack.c.b16 %v1629, %v1628
        %v1641 = vpack.c.b16 %v1631, %v1630
        %v1642 = vpack.c.b16 %v1633, %v1632
        %v1643 = vpack.c.b16 %v1635, %v1634
        %1652 = vmatpush.bf16.msra.mxu0 %v1643
        %1653 = vmatpush.bf16.msra.mxu0 %v1642
        %1654 = vmatpush.bf16.msra.mxu0 %v1641
        %1655 = vmatpush.bf16.msra.mxu0 %v1640
        %1656 = vmatpush.bf16.msra.mxu0 %v1639
        %1657 = vmatpush.bf16.msra.mxu0 %v1638
        %1658 = vmatpush.bf16.msra.mxu0 %v1637
        %1659 = vmatpush.bf16.msra.mxu0 %v1636
        %1660 = vmatmul.bf16.gmra.mxu0 %v1583
        %v1661 = vpop.f32.mrf.mxu0
        %v1662 = vadd.f32 %v1602, %v1661
        %v1663 = vpop.f32.mrf.mxu0
        %1664 = vdwg.mxu0
        %v1665 = vmax.f32 %v1662, 0.0
        %v1666 = vpack.c.bf16 %v1665, %v1665
        %v1667 = vld [vmem:[%s5] sm:$0xf]
        %v1668 = vld [vmem:[%s5 + $0x4] sm:$0xf]
        %v1669 = vld [vmem:[%s5 + $0x8] sm:$0xf]
        %v1670 = vld [vmem:[%s5 + $0xc] sm:$0xf]
        %v1671 = vld [vmem:[%s5 + $0x10] sm:$0xf]
        %v1672 = vld [vmem:[%s5 + $0x14] sm:$0xf]
        %v1673 = vld [vmem:[%s5 + $0x18] sm:$0xf]
        %v1674 = vld [vmem:[%s5 + $0x1c] sm:$0xf]
        %v1675 = vld [vmem:[%s5 + $0x20] sm:$0xf]
        %v1676 = vld [vmem:[%s5 + $0x24] sm:$0xf]
        %v1677 = vld [vmem:[%s5 + $0x28] sm:$0xf]
        %v1678 = vld [vmem:[%s5 + $0x2c] sm:$0xf]
        %v1679 = vld [vmem:[%s5 + $0x30] sm:$0xf]
        %v1680 = vld [vmem:[%s5 + $0x34] sm:$0xf]
        %v1681 = vld [vmem:[%s5 + $0x38] sm:$0xf]
        %v1682 = vld [vmem:[%s5 + $0x3c] sm:$0xf]
        %v1683 = vld [vmem:[%s6] sm:$0x1]
        %v1685 = vperm.slane %v1683, 0
        %v1703 = vunpack.c.l.b16 %v1667
        %v1704 = vunpack.c.l.b16 %v1668
        %v1705 = vunpack.c.l.b16 %v1669
        %v1706 = vunpack.c.l.b16 %v1670
        %v1707 = vunpack.c.l.b16 %v1671
        %v1708 = vunpack.c.l.b16 %v1672
        %v1709 = vunpack.c.l.b16 %v1673
        %v1710 = vunpack.c.l.b16 %v1674
        %v1711 = vunpack.c.l.b16 %v1675
        %v1712 = vunpack.c.l.b16 %v1676
        %v1713 = vunpack.c.l.b16 %v1677
        %v1714 = vunpack.c.l.b16 %v1678
        %v1715 = vunpack.c.l.b16 %v1679
        %v1716 = vunpack.c.l.b16 %v1680
        %v1717 = vunpack.c.l.b16 %v1681
        %v1718 = vunpack.c.l.b16 %v1682
        %v1719 = vpack.c.b16 %v1704, %v1703
        %v1720 = vpack.c.b16 %v1706, %v1705
        %v1721 = vpack.c.b16 %v1708, %v1707
        %v1722 = vpack.c.b16 %v1710, %v1709
        %v1723 = vpack.c.b16 %v1712, %v1711
        %v1724 = vpack.c.b16 %v1714, %v1713
        %v1725 = vpack.c.b16 %v1716, %v1715
        %v1726 = vpack.c.b16 %v1718, %v1717
        %1735 = vmatpush.bf16.msra.mxu0 %v1726
        %1736 = vmatpush.bf16.msra.mxu0 %v1725
        %1737 = vmatpush.bf16.msra.mxu0 %v1724
        %1738 = vmatpush.bf16.msra.mxu0 %v1723
        %1739 = vmatpush.bf16.msra.mxu0 %v1722
        %1740 = vmatpush.bf16.msra.mxu0 %v1721
        %1741 = vmatpush.bf16.msra.mxu0 %v1720
        %1742 = vmatpush.bf16.msra.mxu0 %v1719
        %1743 = vmatmul.bf16.gmra.mxu0 %v1666
        %v1744 = vpop.f32.mrf.mxu0
        %v1745 = vadd.f32 %v1685, %v1744
        %v1746 = vpop.f32.mrf.mxu0
        %1747 = vdwg.mxu0
        %vm1748 = vcmask 64512
        %1749 = vst.msk [vmem:[%s313] sm:$0xff] %vm1748, %v1745
        %p1750 = scmp.lt.s32.totalorder %s22, 1
        %s1751 = scalar_select %p1750, %s22, 1
        %s1752 = smul.addr %s1751, 8
        %s1753 = scalar_lea.vmem %s7, %s1752
        // Predicated region
        $region57: #{tpu_custom_call.1} parent=47 // pred_check
          %p1754 = pneg %p192
        $region58: #{tpu_custom_call.1} parent=47 // pred_check_branch
          %1756 = sbr.rel (%p1754) target = $region60
        $region59: #{tpu_custom_call.1} parent=47 // pred_region
          _
        $region60: #{tpu_custom_call.1} parent=47 // pred_fallthru
          _
      $region48: #{tpu_custom_call.1} parent=5 // pred_fallthru
        _
      %p1757 = scmp.le.s32.totalorder 2, %s17
      // Predicated region
      $region61: #{tpu_custom_call.1} parent=5 // pred_check
        %p1758 = pneg %p1757
      $region62: #{tpu_custom_call.1} parent=5 // pred_check_branch
        %1760 = sbr.rel (%p1758) target = $region64
      $region63: #{tpu_custom_call.1} parent=5 // pred_region
        %s1761 = ssub.s32 %s17, 2
        // Predicated region
        $region65: #{tpu_custom_call.1} parent=63 // pred_check
          %p1762 = pneg %p198
        $region66: #{tpu_custom_call.1} parent=63 // pred_check_branch
          %1764 = sbr.rel (%p1762) target = $region68
        $region67: #{tpu_custom_call.1} parent=63 // pred_region
          %p1765 = scmp.lt.s32.totalorder %s23, 1
          %s1766 = scalar_select %p1765, %s23, 1
          %s1767 = smul.addr %s1766, 8
          %s1768 = scalar_lea.vmem %s7, %s1767
        $region68: #{tpu_custom_call.1} parent=63 // pred_fallthru
          _
      $region64: #{tpu_custom_call.1} parent=5 // pred_fallthru
        _
    $region6: #{tpu_custom_call.1} parent=1 // loop_footer
      %s21 = sadd.s32 1, %s17
    $region7: #{tpu_custom_call.1} parent=1 // loop_footer_branch
      %16 = sbr.rel target = $region3
    $region8: #{tpu_custom_call.1} parent=1 // loop_exit
      _
    %1769 = vsyncpa [#allocation3], 1
    %s1770 = scalar_lea.sflag [#allocation3], 1
    %1771 = vsyncpa %s1770, 1
    %1772 = vsyncpa [#allocation5], 1

</llo_original>
